<compile_context>
chip_gen: v5e
topology: v5e:2x2
jax: 0.10.0
libtpu: 0.0.40
codegen_flags: <defaults>
</compile_context>

<pallas_src>
import functools

import jax
import jax.numpy as jnp
from jax import lax
from jax.experimental import pallas as pl
from jax.experimental.pallas import tpu as pltpu


def _round_up(x, m):
    return ((x + m - 1) // m) * m


# --------------------------- fused block kernel ---------------------------
def _sep_block_kernel(ph_ref, w_ref, shift_ref, out_ref, *, k, stride, Ho, Wo, Hp):
    # ph_ref:    [1, s*s*Hp, Wp, Cin]   phase-decomposed padded input (one image)
    # w_ref:     [k*k, Cin, Coutp]      fused (depthwise * pointwise * BN-scale)
    # shift_ref: [1, Coutp]             folded BatchNorm shift
    # out_ref:   [1, Ho, Wo, Coutp]
    s = stride
    cin = ph_ref.shape[-1]
    coutp = out_ref.shape[-1]

    blk = ph_ref[0]                                    # [s*s*Hp, Wp, Cin]
    acc = jnp.zeros((Ho * Wo, coutp), jnp.float32)
    for ky in range(k):
        for kx in range(k):
            phase = (ky % s) * s + (kx % s)
            r0 = phase * Hp + ky // s
            c0 = kx // s
            tap = blk[r0:r0 + Ho, c0:c0 + Wo, :]       # [Ho, Wo, Cin]
            tap = tap.reshape(Ho * Wo, cin)
            # depthwise tap + 1x1 conv + BN scale, all folded into one MXU matmul
            acc = acc + jnp.dot(tap, w_ref[ky * k + kx],
                                preferred_element_type=jnp.float32)

    y = jnp.maximum(acc + shift_ref[...], 0.0)         # BN shift + ReLU (f32)
    out_ref[0] = y.reshape(Ho, Wo, coutp).astype(out_ref.dtype)


def sep_block(x_nhwc, dw, pw, gamma, beta, mean, var, *, stride, padding,
              eps=1e-5, compute_dtype=jnp.bfloat16, out_dtype=jnp.float32):
    """One (depthwise -> pointwise -> BN -> ReLU) block. x_nhwc: [N,H,W,Cin]."""
    N, H, W, Cin = x_nhwc.shape
    k = dw.shape[0]                       # dw: [k, k, Cin]
    Cout = pw.shape[1]                    # pw: [Cin, Cout]
    s = stride

    Ho = (H + 2 * padding - k) // s + 1
    Wo = (W + 2 * padding - k) // s + 1
    Coutp = _round_up(Cout, 128)          # lane-dense output width

    # --- glue: zero-pad + stride-phase de-interleave (same size as input) ---
    Hp = Ho + (k - 1) // s                # rows per phase image
    Wp = Wo + (k - 1) // s
    xp = jnp.pad(x_nhwc, ((0, 0),
                          (padding, s * Hp - H - padding),
                          (padding, s * Wp - W - padding),
                          (0, 0)))
    phases = jnp.stack([xp[:, py::s, px::s, :]
                        for py in range(s) for px in range(s)], axis=1)
    phases = phases.reshape(N, s * s * Hp, Wp, Cin).astype(compute_dtype)

    # --- fold depthwise * pointwise * BN-scale into per-tap MXU weights ---
    inv_std = gamma / jnp.sqrt(var + eps)                       # [Cout]
    wf = (dw.reshape(k * k, Cin, 1)
          * pw.reshape(1, Cin, Cout)
          * inv_std.reshape(1, 1, Cout))
    wf = jnp.pad(wf, ((0, 0), (0, 0), (0, Coutp - Cout))).astype(compute_dtype)
    shift = jnp.pad(beta - mean * inv_std, (0, Coutp - Cout))
    shift = shift.reshape(1, Coutp).astype(jnp.float32)

    kern = functools.partial(_sep_block_kernel, k=k, stride=s, Ho=Ho, Wo=Wo, Hp=Hp)

    out = pl.pallas_call(
        kern,
        out_shape=jax.ShapeDtypeStruct((N, Ho, Wo, Coutp), out_dtype),
        grid=(N,),
        in_specs=[
            pl.BlockSpec((1, s * s * Hp, Wp, Cin), lambda n: (n, 0, 0, 0)),
            pl.BlockSpec((k * k, Cin, Coutp), lambda n: (0, 0, 0)),
            pl.BlockSpec((1, Coutp), lambda n: (0, 0)),
        ],
        out_specs=pl.BlockSpec((1, Ho, Wo, Coutp), lambda n: (n, 0, 0, 0)),
        compiler_params=pltpu.CompilerParams(dimension_semantics=("parallel",)),
    )(phases, wf, shift)

    return out[..., :Cout]                # un-pad channels in the wrapper


def sepconv_forward(x_nchw, params, *, compute_dtype=jnp.bfloat16):
    """SepConv forward. Input/output NCHW to match the PyTorch module."""
    x = jnp.transpose(x_nchw, (0, 2, 3, 1))          # -> NHWC
    p = params
    # block1: inter-block activation kept in bf16 (halves HBM traffic)
    y = sep_block(x, p["dw1"], p["pw1"], p["bn1_gamma"], p["bn1_beta"],
                  p["bn1_mean"], p["bn1_var"], stride=2, padding=1,
                  compute_dtype=compute_dtype, out_dtype=compute_dtype)
    y = sep_block(y, p["dw2"], p["pw2"], p["bn2_gamma"], p["bn2_beta"],
                  p["bn2_mean"], p["bn2_var"], stride=1, padding=1,
                  compute_dtype=compute_dtype, out_dtype=jnp.float32)
    return jnp.transpose(y, (0, 3, 1, 2))            # -> NCHW


# ------------------ pure-JAX references (for checking) ---------------------
def _ref_block_f32(x, dw, pw, gamma, beta, mean, var, *, stride, padding, eps=1e-5):
    """Module-semantics reference: full f32 convs + BN(eval) + ReLU."""
    Cin = x.shape[-1]
    k = dw.shape[0]
    w_dw = dw.reshape(k, k, 1, Cin)
    y = lax.conv_general_dilated(
        x, w_dw, window_strides=(stride, stride),
        padding=[(padding, padding), (padding, padding)],
        dimension_numbers=("NHWC", "HWIO", "NHWC"),
        feature_group_count=Cin)
    w_pw = pw.reshape(1, 1, *pw.shape)
    y = lax.conv_general_dilated(
        y, w_pw, window_strides=(1, 1), padding=[(0, 0), (0, 0)],
        dimension_numbers=("NHWC", "HWIO", "NHWC"))
    y = (y - mean) / jnp.sqrt(var + eps) * gamma + beta
    return jnp.maximum(y, 0.0)


def sepconv_reference_f32(x_nchw, p):
    x = jnp.transpose(x_nchw, (0, 2, 3, 1))
    y = _ref_block_f32(x, p["dw1"], p["pw1"], p["bn1_gamma"], p["bn1_beta"],
                       p["bn1_mean"], p["bn1_var"], stride=2, padding=1)
    y = _ref_block_f32(y, p["dw2"], p["pw2"], p["bn2_gamma"], p["bn2_beta"],
                       p["bn2_mean"], p["bn2_var"], stride=1, padding=1)
    return jnp.transpose(y, (0, 3, 1, 2))


def _ref_block_matched(x, dw, pw, gamma, beta, mean, var, *, stride, padding,
                       eps=1e-5, compute_dtype=jnp.bfloat16, out_dtype=jnp.float32):
    """Pure-XLA reference using the exact same bf16 folding as the kernel."""
    N, H, W, Cin = x.shape
    k = dw.shape[0]
    Cout = pw.shape[1]
    s = stride
    Ho = (H + 2 * padding - k) // s + 1
    Wo = (W + 2 * padding - k) // s + 1
    inv_std = gamma / jnp.sqrt(var + eps)
    wf = (dw.reshape(k * k, Cin, 1) * pw.reshape(1, Cin, Cout)
          * inv_std.reshape(1, 1, Cout)).astype(compute_dtype).astype(jnp.float32)
    shift = (beta - mean * inv_std).astype(jnp.float32)
    xp = jnp.pad(x, ((0, 0), (padding, padding), (padding, padding), (0, 0)))
    xp = xp.astype(compute_dtype).astype(jnp.float32)
    acc = jnp.zeros((N, Ho, Wo, Cout), jnp.float32)
    for ky in range(k):
        for kx in range(k):
            tap = xp[:, ky:ky + (Ho - 1) * s + 1:s, kx:kx + (Wo - 1) * s + 1:s, :]
            acc = acc + jnp.einsum("nhwc,co->nhwo", tap, wf[ky * k + kx])
    y = jnp.maximum(acc + shift, 0.0)
    return y.astype(out_dtype)


def sepconv_reference_matched(x_nchw, p, *, compute_dtype=jnp.bfloat16):
    x = jnp.transpose(x_nchw, (0, 2, 3, 1))
    y = _ref_block_matched(x, p["dw1"], p["pw1"], p["bn1_gamma"], p["bn1_beta"],
                           p["bn1_mean"], p["bn1_var"], stride=2, padding=1,
                           compute_dtype=compute_dtype, out_dtype=compute_dtype)
    y = _ref_block_matched(y, p["dw2"], p["pw2"], p["bn2_gamma"], p["bn2_beta"],
                           p["bn2_mean"], p["bn2_var"], stride=1, padding=1,
                           compute_dtype=compute_dtype, out_dtype=jnp.float32)
    return jnp.transpose(y, (0, 3, 1, 2))


def init_params(key, c_in, c_out, k=3):
    ks = jax.random.split(key, 10)
    f32 = jnp.float32
    return {
        "dw1": 0.2 * jax.random.normal(ks[0], (k, k, c_in), f32),
        "pw1": 0.2 * jax.random.normal(ks[1], (c_in, c_in), f32),
        "bn1_gamma": 1.0 + 0.1 * jax.random.normal(ks[2], (c_in,), f32),
        "bn1_beta": 0.1 * jax.random.normal(ks[3], (c_in,), f32),
        "bn1_mean": 0.1 * jax.random.normal(ks[4], (c_in,), f32),
        "bn1_var": 0.5 + jax.random.uniform(ks[5], (c_in,), f32),
        "dw2": 0.2 * jax.random.normal(ks[6], (k, k, c_in), f32),
        "pw2": 0.2 * jax.random.normal(ks[7], (c_in, c_out), f32),
        "bn2_gamma": 1.0 + 0.1 * jax.random.normal(ks[8], (c_out,), f32),
        "bn2_beta": 0.1 * jax.random.normal(ks[9], (c_out,), f32),
        "bn2_mean": jnp.zeros((c_out,), f32),
        "bn2_var": jnp.ones((c_out,), f32),
    }


if __name__ == "__main__":
    N, C_in, C_out, H, W = 2, 4, 8, 16, 16

    key = jax.random.PRNGKey(0)
    kx_, kp = jax.random.split(key)
    x = jax.random.normal(kx_, (N, C_in, H, W), jnp.float32)   # NCHW like PyTorch
    params = init_params(kp, C_in, C_out)

    out = jax.jit(sepconv_forward)(x, params)
    out = jax.block_until_ready(out)

    assert out.shape == (N, C_out, H // 2, W // 2), out.shape

    # tight check vs a pure-XLA reference with identical bf16 folding
    ref_m = sepconv_reference_matched(x, params)
    err_m = float(jnp.max(jnp.abs(out - ref_m)))
    assert err_m < 1e-3, err_m

    # loose check vs the full-f32 module-semantics reference (bf16 tolerance)
    ref_f = sepconv_reference_f32(x, params)
    err_f = float(jnp.max(jnp.abs(out - ref_f)))
    assert err_f < 1e-1, err_f

    print("KERNEL_OK")
</pallas_src>

<mosaic_0001>
module attributes {stable_mosaic.version = 11 : i64} {
  func.func @_sep_block_kernel(%arg0: i32, %arg1: memref<1x36x9x4xbf16, #tpu.memory_space<vmem>>, %arg2: memref<9x4x128xbf16, #tpu.memory_space<vmem>>, %arg3: memref<1x128xf32, #tpu.memory_space<vmem>>, %arg4: memref<1x8x8x128xbf16, #tpu.memory_space<vmem>>) attributes {dimension_semantics = [#tpu.dimension_semantics<parallel>], iteration_bounds = array<i64: 2>, scalar_prefetch = 0 : i64, scratch_operands = 0 : i64, tpu.core_type = #tpu.core_type<tc>, window_params = [{transform_indices = @transform_0, window_bounds = array<i64: 1, 36, 9, 4>}, {pipeline_mode = #tpu.pipeline_mode<synchronous>, transform_indices = @transform_1, window_bounds = array<i64: 9, 4, 128>}, {pipeline_mode = #tpu.pipeline_mode<synchronous>, transform_indices = @transform_2, window_bounds = array<i64: 1, 128>}, {transform_indices = @transform_3, window_bounds = array<i64: 1, 8, 8, 128>}]} {
    %c0 = arith.constant 0 : index
    %c0_0 = arith.constant 0 : index
    %c0_1 = arith.constant 0 : index
    %c0_2 = arith.constant 0 : index
    %0 = vector.load %arg1[%c0, %c0_0, %c0_1, %c0_2] : memref<1x36x9x4xbf16, #tpu.memory_space<vmem>>, vector<1x36x9x4xbf16>
    %1 = vector.shape_cast %0 : vector<1x36x9x4xbf16> to vector<36x9x4xbf16>
    %cst = arith.constant 0.000000e+00 : f32
    %2 = vector.broadcast %cst : f32 to vector<64x128xf32>
    %3 = vector.extract_strided_slice %1 {offsets = [0, 0, 0], sizes = [8, 8, 4], strides = [1, 1, 1]} : vector<36x9x4xbf16> to vector<8x8x4xbf16>
    %4 = vector.shape_cast %3 : vector<8x8x4xbf16> to vector<64x4xbf16>
    %c0_3 = arith.constant 0 : index
    %c0_4 = arith.constant 0 : index
    %c0_5 = arith.constant 0 : index
    %5 = vector.load %arg2[%c0_3, %c0_4, %c0_5] : memref<9x4x128xbf16, #tpu.memory_space<vmem>>, vector<1x4x128xbf16>
    %6 = vector.shape_cast %5 : vector<1x4x128xbf16> to vector<4x128xbf16>
    %cst_6 = arith.constant dense<0.000000e+00> : vector<64x128xf32>
    %7 = tpu.matmul %4, %6, %cst_6 {dimension_numbers = #tpu.dot_dimension_numbers<[1], [0], [0], [1], [0, 0, 1, 1], [], []>} : vector<64x4xbf16>, vector<4x128xbf16>, vector<64x128xf32> -> vector<64x128xf32>
    %8 = arith.addf %2, %7 : vector<64x128xf32>
    %9 = vector.extract_strided_slice %1 {offsets = [9, 0, 0], sizes = [8, 8, 4], strides = [1, 1, 1]} : vector<36x9x4xbf16> to vector<8x8x4xbf16>
    %10 = vector.shape_cast %9 : vector<8x8x4xbf16> to vector<64x4xbf16>
    %c1 = arith.constant 1 : index
    %c0_7 = arith.constant 0 : index
    %c0_8 = arith.constant 0 : index
    %11 = vector.load %arg2[%c1, %c0_7, %c0_8] : memref<9x4x128xbf16, #tpu.memory_space<vmem>>, vector<1x4x128xbf16>
    %12 = vector.shape_cast %11 : vector<1x4x128xbf16> to vector<4x128xbf16>
    %cst_9 = arith.constant dense<0.000000e+00> : vector<64x128xf32>
    %13 = tpu.matmul %10, %12, %cst_9 {dimension_numbers = #tpu.dot_dimension_numbers<[1], [0], [0], [1], [0, 0, 1, 1], [], []>} : vector<64x4xbf16>, vector<4x128xbf16>, vector<64x128xf32> -> vector<64x128xf32>
    %14 = arith.addf %8, %13 : vector<64x128xf32>
    %15 = vector.extract_strided_slice %1 {offsets = [0, 1, 0], sizes = [8, 8, 4], strides = [1, 1, 1]} : vector<36x9x4xbf16> to vector<8x8x4xbf16>
    %16 = vector.shape_cast %15 : vector<8x8x4xbf16> to vector<64x4xbf16>
    %c2 = arith.constant 2 : index
    %c0_10 = arith.constant 0 : index
    %c0_11 = arith.constant 0 : index
    %17 = vector.load %arg2[%c2, %c0_10, %c0_11] : memref<9x4x128xbf16, #tpu.memory_space<vmem>>, vector<1x4x128xbf16>
    %18 = vector.shape_cast %17 : vector<1x4x128xbf16> to vector<4x128xbf16>
    %cst_12 = arith.constant dense<0.000000e+00> : vector<64x128xf32>
    %19 = tpu.matmul %16, %18, %cst_12 {dimension_numbers = #tpu.dot_dimension_numbers<[1], [0], [0], [1], [0, 0, 1, 1], [], []>} : vector<64x4xbf16>, vector<4x128xbf16>, vector<64x128xf32> -> vector<64x128xf32>
    %20 = arith.addf %14, %19 : vector<64x128xf32>
    %21 = vector.extract_strided_slice %1 {offsets = [18, 0, 0], sizes = [8, 8, 4], strides = [1, 1, 1]} : vector<36x9x4xbf16> to vector<8x8x4xbf16>
    %22 = vector.shape_cast %21 : vector<8x8x4xbf16> to vector<64x4xbf16>
    %c3 = arith.constant 3 : index
    %c0_13 = arith.constant 0 : index
    %c0_14 = arith.constant 0 : index
    %23 = vector.load %arg2[%c3, %c0_13, %c0_14] : memref<9x4x128xbf16, #tpu.memory_space<vmem>>, vector<1x4x128xbf16>
    %24 = vector.shape_cast %23 : vector<1x4x128xbf16> to vector<4x128xbf16>
    %cst_15 = arith.constant dense<0.000000e+00> : vector<64x128xf32>
    %25 = tpu.matmul %22, %24, %cst_15 {dimension_numbers = #tpu.dot_dimension_numbers<[1], [0], [0], [1], [0, 0, 1, 1], [], []>} : vector<64x4xbf16>, vector<4x128xbf16>, vector<64x128xf32> -> vector<64x128xf32>
    %26 = arith.addf %20, %25 : vector<64x128xf32>
    %27 = vector.extract_strided_slice %1 {offsets = [27, 0, 0], sizes = [8, 8, 4], strides = [1, 1, 1]} : vector<36x9x4xbf16> to vector<8x8x4xbf16>
    %28 = vector.shape_cast %27 : vector<8x8x4xbf16> to vector<64x4xbf16>
    %c4 = arith.constant 4 : index
    %c0_16 = arith.constant 0 : index
    %c0_17 = arith.constant 0 : index
    %29 = vector.load %arg2[%c4, %c0_16, %c0_17] : memref<9x4x128xbf16, #tpu.memory_space<vmem>>, vector<1x4x128xbf16>
    %30 = vector.shape_cast %29 : vector<1x4x128xbf16> to vector<4x128xbf16>
    %cst_18 = arith.constant dense<0.000000e+00> : vector<64x128xf32>
    %31 = tpu.matmul %28, %30, %cst_18 {dimension_numbers = #tpu.dot_dimension_numbers<[1], [0], [0], [1], [0, 0, 1, 1], [], []>} : vector<64x4xbf16>, vector<4x128xbf16>, vector<64x128xf32> -> vector<64x128xf32>
    %32 = arith.addf %26, %31 : vector<64x128xf32>
    %33 = vector.extract_strided_slice %1 {offsets = [18, 1, 0], sizes = [8, 8, 4], strides = [1, 1, 1]} : vector<36x9x4xbf16> to vector<8x8x4xbf16>
    %34 = vector.shape_cast %33 : vector<8x8x4xbf16> to vector<64x4xbf16>
    %c5 = arith.constant 5 : index
    %c0_19 = arith.constant 0 : index
    %c0_20 = arith.constant 0 : index
    %35 = vector.load %arg2[%c5, %c0_19, %c0_20] : memref<9x4x128xbf16, #tpu.memory_space<vmem>>, vector<1x4x128xbf16>
    %36 = vector.shape_cast %35 : vector<1x4x128xbf16> to vector<4x128xbf16>
    %cst_21 = arith.constant dense<0.000000e+00> : vector<64x128xf32>
    %37 = tpu.matmul %34, %36, %cst_21 {dimension_numbers = #tpu.dot_dimension_numbers<[1], [0], [0], [1], [0, 0, 1, 1], [], []>} : vector<64x4xbf16>, vector<4x128xbf16>, vector<64x128xf32> -> vector<64x128xf32>
    %38 = arith.addf %32, %37 : vector<64x128xf32>
    %39 = vector.extract_strided_slice %1 {offsets = [1, 0, 0], sizes = [8, 8, 4], strides = [1, 1, 1]} : vector<36x9x4xbf16> to vector<8x8x4xbf16>
    %40 = vector.shape_cast %39 : vector<8x8x4xbf16> to vector<64x4xbf16>
    %c6 = arith.constant 6 : index
    %c0_22 = arith.constant 0 : index
    %c0_23 = arith.constant 0 : index
    %41 = vector.load %arg2[%c6, %c0_22, %c0_23] : memref<9x4x128xbf16, #tpu.memory_space<vmem>>, vector<1x4x128xbf16>
    %42 = vector.shape_cast %41 : vector<1x4x128xbf16> to vector<4x128xbf16>
    %cst_24 = arith.constant dense<0.000000e+00> : vector<64x128xf32>
    %43 = tpu.matmul %40, %42, %cst_24 {dimension_numbers = #tpu.dot_dimension_numbers<[1], [0], [0], [1], [0, 0, 1, 1], [], []>} : vector<64x4xbf16>, vector<4x128xbf16>, vector<64x128xf32> -> vector<64x128xf32>
    %44 = arith.addf %38, %43 : vector<64x128xf32>
    %45 = vector.extract_strided_slice %1 {offsets = [10, 0, 0], sizes = [8, 8, 4], strides = [1, 1, 1]} : vector<36x9x4xbf16> to vector<8x8x4xbf16>
    %46 = vector.shape_cast %45 : vector<8x8x4xbf16> to vector<64x4xbf16>
    %c7 = arith.constant 7 : index
    %c0_25 = arith.constant 0 : index
    %c0_26 = arith.constant 0 : index
    %47 = vector.load %arg2[%c7, %c0_25, %c0_26] : memref<9x4x128xbf16, #tpu.memory_space<vmem>>, vector<1x4x128xbf16>
    %48 = vector.shape_cast %47 : vector<1x4x128xbf16> to vector<4x128xbf16>
    %cst_27 = arith.constant dense<0.000000e+00> : vector<64x128xf32>
    %49 = tpu.matmul %46, %48, %cst_27 {dimension_numbers = #tpu.dot_dimension_numbers<[1], [0], [0], [1], [0, 0, 1, 1], [], []>} : vector<64x4xbf16>, vector<4x128xbf16>, vector<64x128xf32> -> vector<64x128xf32>
    %50 = arith.addf %44, %49 : vector<64x128xf32>
    %51 = vector.extract_strided_slice %1 {offsets = [1, 1, 0], sizes = [8, 8, 4], strides = [1, 1, 1]} : vector<36x9x4xbf16> to vector<8x8x4xbf16>
    %52 = vector.shape_cast %51 : vector<8x8x4xbf16> to vector<64x4xbf16>
    %c8 = arith.constant 8 : index
    %c0_28 = arith.constant 0 : index
    %c0_29 = arith.constant 0 : index
    %53 = vector.load %arg2[%c8, %c0_28, %c0_29] : memref<9x4x128xbf16, #tpu.memory_space<vmem>>, vector<1x4x128xbf16>
    %54 = vector.shape_cast %53 : vector<1x4x128xbf16> to vector<4x128xbf16>
    %cst_30 = arith.constant dense<0.000000e+00> : vector<64x128xf32>
    %55 = tpu.matmul %52, %54, %cst_30 {dimension_numbers = #tpu.dot_dimension_numbers<[1], [0], [0], [1], [0, 0, 1, 1], [], []>} : vector<64x4xbf16>, vector<4x128xbf16>, vector<64x128xf32> -> vector<64x128xf32>
    %56 = arith.addf %50, %55 : vector<64x128xf32>
    %c0_31 = arith.constant 0 : index
    %c0_32 = arith.constant 0 : index
    %57 = vector.load %arg3[%c0_31, %c0_32] : memref<1x128xf32, #tpu.memory_space<vmem>>, vector<1x128xf32>
    %58 = vector.broadcast %57 : vector<1x128xf32> to vector<64x128xf32>
    %59 = arith.addf %56, %58 : vector<64x128xf32>
    %cst_33 = arith.constant 0.000000e+00 : f32
    %60 = vector.broadcast %cst_33 : f32 to vector<64x128xf32>
    %61 = arith.maximumf %59, %60 : vector<64x128xf32>
    %62 = vector.shape_cast %61 : vector<64x128xf32> to vector<8x8x128xf32>
    %63 = arith.truncf %62 : vector<8x8x128xf32> to vector<8x8x128xbf16>
    %c0_34 = arith.constant 0 : index
    %c0_35 = arith.constant 0 : index
    %c0_36 = arith.constant 0 : index
    %c0_37 = arith.constant 0 : index
    %64 = vector.load %arg4[%c0_34, %c0_35, %c0_36, %c0_37] : memref<1x8x8x128xbf16, #tpu.memory_space<vmem>>, vector<1x8x8x128xbf16>
    %65 = vector.shape_cast %64 : vector<1x8x8x128xbf16> to vector<8x8x128xbf16>
    %66 = vector.shape_cast %63 : vector<8x8x128xbf16> to vector<1x8x8x128xbf16>
    tpu.vector_store %arg4[%c0_34, %c0_35, %c0_36, %c0_37], %66 {strides = array<i32>} : memref<1x8x8x128xbf16, #tpu.memory_space<vmem>>, vector<1x8x8x128xbf16>,
    return
  }
  func.func @transform_0(%arg0: i32) -> (i32, i32, i32, i32) {
    %c0_i32 = arith.constant 0 : i32
    %c0_i32_0 = arith.constant 0 : i32
    %c0_i32_1 = arith.constant 0 : i32
    %c0_i32_2 = arith.constant 0 : i32
    return %arg0, %c0_i32, %c0_i32_0, %c0_i32_1 : i32, i32, i32, i32
  }
  func.func @transform_1(%arg0: i32) -> (i32, i32, i32) {
    %c0_i32 = arith.constant 0 : i32
    %c0_i32_0 = arith.constant 0 : i32
    %c0_i32_1 = arith.constant 0 : i32
    %c0_i32_2 = arith.constant 0 : i32
    return %c0_i32, %c0_i32_0, %c0_i32_1 : i32, i32, i32
  }
  func.func @transform_2(%arg0: i32) -> (i32, i32) {
    %c0_i32 = arith.constant 0 : i32
    %c0_i32_0 = arith.constant 0 : i32
    %c0_i32_1 = arith.constant 0 : i32
    return %c0_i32, %c0_i32_0 : i32, i32
  }
  func.func @transform_3(%arg0: i32) -> (i32, i32, i32, i32) {
    %c0_i32 = arith.constant 0 : i32
    %c0_i32_0 = arith.constant 0 : i32
    %c0_i32_1 = arith.constant 0 : i32
    %c0_i32_2 = arith.constant 0 : i32
    return %arg0, %c0_i32, %c0_i32_0, %c0_i32_1 : i32, i32, i32, i32
  }
}

module attributes {stable_mosaic.version = 11 : i64} {
  func.func @_sep_block_kernel(%arg0: i32, %arg1: memref<1x10x10x4xbf16, #tpu.memory_space<vmem>>, %arg2: memref<9x4x128xbf16, #tpu.memory_space<vmem>>, %arg3: memref<1x128xf32, #tpu.memory_space<vmem>>, %arg4: memref<1x8x8x128xf32, #tpu.memory_space<vmem>>) attributes {dimension_semantics = [#tpu.dimension_semantics<parallel>], iteration_bounds = array<i64: 2>, scalar_prefetch = 0 : i64, scratch_operands = 0 : i64, tpu.core_type = #tpu.core_type<tc>, window_params = [{transform_indices = @transform_0, window_bounds = array<i64: 1, 10, 10, 4>}, {pipeline_mode = #tpu.pipeline_mode<synchronous>, transform_indices = @transform_1, window_bounds = array<i64: 9, 4, 128>}, {pipeline_mode = #tpu.pipeline_mode<synchronous>, transform_indices = @transform_2, window_bounds = array<i64: 1, 128>}, {transform_indices = @transform_3, window_bounds = array<i64: 1, 8, 8, 128>}]} {
    %c0 = arith.constant 0 : index
    %c0_0 = arith.constant 0 : index
    %c0_1 = arith.constant 0 : index
    %c0_2 = arith.constant 0 : index
    %0 = vector.load %arg1[%c0, %c0_0, %c0_1, %c0_2] : memref<1x10x10x4xbf16, #tpu.memory_space<vmem>>, vector<1x10x10x4xbf16>
    %1 = vector.shape_cast %0 : vector<1x10x10x4xbf16> to vector<10x10x4xbf16>
    %cst = arith.constant 0.000000e+00 : f32
    %2 = vector.broadcast %cst : f32 to vector<64x128xf32>
    %3 = vector.extract_strided_slice %1 {offsets = [0, 0, 0], sizes = [8, 8, 4], strides = [1, 1, 1]} : vector<10x10x4xbf16> to vector<8x8x4xbf16>
    %4 = vector.shape_cast %3 : vector<8x8x4xbf16> to vector<64x4xbf16>
    %c0_3 = arith.constant 0 : index
    %c0_4 = arith.constant 0 : index
    %c0_5 = arith.constant 0 : index
    %5 = vector.load %arg2[%c0_3, %c0_4, %c0_5] : memref<9x4x128xbf16, #tpu.memory_space<vmem>>, vector<1x4x128xbf16>
    %6 = vector.shape_cast %5 : vector<1x4x128xbf16> to vector<4x128xbf16>
    %cst_6 = arith.constant dense<0.000000e+00> : vector<64x128xf32>
    %7 = tpu.matmul %4, %6, %cst_6 {dimension_numbers = #tpu.dot_dimension_numbers<[1], [0], [0], [1], [0, 0, 1, 1], [], []>} : vector<64x4xbf16>, vector<4x128xbf16>, vector<64x128xf32> -> vector<64x128xf32>
    %8 = arith.addf %2, %7 : vector<64x128xf32>
    %9 = vector.extract_strided_slice %1 {offsets = [0, 1, 0], sizes = [8, 8, 4], strides = [1, 1, 1]} : vector<10x10x4xbf16> to vector<8x8x4xbf16>
    %10 = vector.shape_cast %9 : vector<8x8x4xbf16> to vector<64x4xbf16>
    %c1 = arith.constant 1 : index
    %c0_7 = arith.constant 0 : index
    %c0_8 = arith.constant 0 : index
    %11 = vector.load %arg2[%c1, %c0_7, %c0_8] : memref<9x4x128xbf16, #tpu.memory_space<vmem>>, vector<1x4x128xbf16>
    %12 = vector.shape_cast %11 : vector<1x4x128xbf16> to vector<4x128xbf16>
    %cst_9 = arith.constant dense<0.000000e+00> : vector<64x128xf32>
    %13 = tpu.matmul %10, %12, %cst_9 {dimension_numbers = #tpu.dot_dimension_numbers<[1], [0], [0], [1], [0, 0, 1, 1], [], []>} : vector<64x4xbf16>, vector<4x128xbf16>, vector<64x128xf32> -> vector<64x128xf32>
    %14 = arith.addf %8, %13 : vector<64x128xf32>
    %15 = vector.extract_strided_slice %1 {offsets = [0, 2, 0], sizes = [8, 8, 4], strides = [1, 1, 1]} : vector<10x10x4xbf16> to vector<8x8x4xbf16>
    %16 = vector.shape_cast %15 : vector<8x8x4xbf16> to vector<64x4xbf16>
    %c2 = arith.constant 2 : index
    %c0_10 = arith.constant 0 : index
    %c0_11 = arith.constant 0 : index
    %17 = vector.load %arg2[%c2, %c0_10, %c0_11] : memref<9x4x128xbf16, #tpu.memory_space<vmem>>, vector<1x4x128xbf16>
    %18 = vector.shape_cast %17 : vector<1x4x128xbf16> to vector<4x128xbf16>
    %cst_12 = arith.constant dense<0.000000e+00> : vector<64x128xf32>
    %19 = tpu.matmul %16, %18, %cst_12 {dimension_numbers = #tpu.dot_dimension_numbers<[1], [0], [0], [1], [0, 0, 1, 1], [], []>} : vector<64x4xbf16>, vector<4x128xbf16>, vector<64x128xf32> -> vector<64x128xf32>
    %20 = arith.addf %14, %19 : vector<64x128xf32>
    %21 = vector.extract_strided_slice %1 {offsets = [1, 0, 0], sizes = [8, 8, 4], strides = [1, 1, 1]} : vector<10x10x4xbf16> to vector<8x8x4xbf16>
    %22 = vector.shape_cast %21 : vector<8x8x4xbf16> to vector<64x4xbf16>
    %c3 = arith.constant 3 : index
    %c0_13 = arith.constant 0 : index
    %c0_14 = arith.constant 0 : index
    %23 = vector.load %arg2[%c3, %c0_13, %c0_14] : memref<9x4x128xbf16, #tpu.memory_space<vmem>>, vector<1x4x128xbf16>
    %24 = vector.shape_cast %23 : vector<1x4x128xbf16> to vector<4x128xbf16>
    %cst_15 = arith.constant dense<0.000000e+00> : vector<64x128xf32>
    %25 = tpu.matmul %22, %24, %cst_15 {dimension_numbers = #tpu.dot_dimension_numbers<[1], [0], [0], [1], [0, 0, 1, 1], [], []>} : vector<64x4xbf16>, vector<4x128xbf16>, vector<64x128xf32> -> vector<64x128xf32>
    %26 = arith.addf %20, %25 : vector<64x128xf32>
    %27 = vector.extract_strided_slice %1 {offsets = [1, 1, 0], sizes = [8, 8, 4], strides = [1, 1, 1]} : vector<10x10x4xbf16> to vector<8x8x4xbf16>
    %28 = vector.shape_cast %27 : vector<8x8x4xbf16> to vector<64x4xbf16>
    %c4 = arith.constant 4 : index
    %c0_16 = arith.constant 0 : index
    %c0_17 = arith.constant 0 : index
    %29 = vector.load %arg2[%c4, %c0_16, %c0_17] : memref<9x4x128xbf16, #tpu.memory_space<vmem>>, vector<1x4x128xbf16>
    %30 = vector.shape_cast %29 : vector<1x4x128xbf16> to vector<4x128xbf16>
    %cst_18 = arith.constant dense<0.000000e+00> : vector<64x128xf32>
    %31 = tpu.matmul %28, %30, %cst_18 {dimension_numbers = #tpu.dot_dimension_numbers<[1], [0], [0], [1], [0, 0, 1, 1], [], []>} : vector<64x4xbf16>, vector<4x128xbf16>, vector<64x128xf32> -> vector<64x128xf32>
    %32 = arith.addf %26, %31 : vector<64x128xf32>
    %33 = vector.extract_strided_slice %1 {offsets = [1, 2, 0], sizes = [8, 8, 4], strides = [1, 1, 1]} : vector<10x10x4xbf16> to vector<8x8x4xbf16>
    %34 = vector.shape_cast %33 : vector<8x8x4xbf16> to vector<64x4xbf16>
    %c5 = arith.constant 5 : index
    %c0_19 = arith.constant 0 : index
    %c0_20 = arith.constant 0 : index
    %35 = vector.load %arg2[%c5, %c0_19, %c0_20] : memref<9x4x128xbf16, #tpu.memory_space<vmem>>, vector<1x4x128xbf16>
    %36 = vector.shape_cast %35 : vector<1x4x128xbf16> to vector<4x128xbf16>
    %cst_21 = arith.constant dense<0.000000e+00> : vector<64x128xf32>
    %37 = tpu.matmul %34, %36, %cst_21 {dimension_numbers = #tpu.dot_dimension_numbers<[1], [0], [0], [1], [0, 0, 1, 1], [], []>} : vector<64x4xbf16>, vector<4x128xbf16>, vector<64x128xf32> -> vector<64x128xf32>
    %38 = arith.addf %32, %37 : vector<64x128xf32>
    %39 = vector.extract_strided_slice %1 {offsets = [2, 0, 0], sizes = [8, 8, 4], strides = [1, 1, 1]} : vector<10x10x4xbf16> to vector<8x8x4xbf16>
    %40 = vector.shape_cast %39 : vector<8x8x4xbf16> to vector<64x4xbf16>
    %c6 = arith.constant 6 : index
    %c0_22 = arith.constant 0 : index
    %c0_23 = arith.constant 0 : index
    %41 = vector.load %arg2[%c6, %c0_22, %c0_23] : memref<9x4x128xbf16, #tpu.memory_space<vmem>>, vector<1x4x128xbf16>
    %42 = vector.shape_cast %41 : vector<1x4x128xbf16> to vector<4x128xbf16>
    %cst_24 = arith.constant dense<0.000000e+00> : vector<64x128xf32>
    %43 = tpu.matmul %40, %42, %cst_24 {dimension_numbers = #tpu.dot_dimension_numbers<[1], [0], [0], [1], [0, 0, 1, 1], [], []>} : vector<64x4xbf16>, vector<4x128xbf16>, vector<64x128xf32> -> vector<64x128xf32>
    %44 = arith.addf %38, %43 : vector<64x128xf32>
    %45 = vector.extract_strided_slice %1 {offsets = [2, 1, 0], sizes = [8, 8, 4], strides = [1, 1, 1]} : vector<10x10x4xbf16> to vector<8x8x4xbf16>
    %46 = vector.shape_cast %45 : vector<8x8x4xbf16> to vector<64x4xbf16>
    %c7 = arith.constant 7 : index
    %c0_25 = arith.constant 0 : index
    %c0_26 = arith.constant 0 : index
    %47 = vector.load %arg2[%c7, %c0_25, %c0_26] : memref<9x4x128xbf16, #tpu.memory_space<vmem>>, vector<1x4x128xbf16>
    %48 = vector.shape_cast %47 : vector<1x4x128xbf16> to vector<4x128xbf16>
    %cst_27 = arith.constant dense<0.000000e+00> : vector<64x128xf32>
    %49 = tpu.matmul %46, %48, %cst_27 {dimension_numbers = #tpu.dot_dimension_numbers<[1], [0], [0], [1], [0, 0, 1, 1], [], []>} : vector<64x4xbf16>, vector<4x128xbf16>, vector<64x128xf32> -> vector<64x128xf32>
    %50 = arith.addf %44, %49 : vector<64x128xf32>
    %51 = vector.extract_strided_slice %1 {offsets = [2, 2, 0], sizes = [8, 8, 4], strides = [1, 1, 1]} : vector<10x10x4xbf16> to vector<8x8x4xbf16>
    %52 = vector.shape_cast %51 : vector<8x8x4xbf16> to vector<64x4xbf16>
    %c8 = arith.constant 8 : index
    %c0_28 = arith.constant 0 : index
    %c0_29 = arith.constant 0 : index
    %53 = vector.load %arg2[%c8, %c0_28, %c0_29] : memref<9x4x128xbf16, #tpu.memory_space<vmem>>, vector<1x4x128xbf16>
    %54 = vector.shape_cast %53 : vector<1x4x128xbf16> to vector<4x128xbf16>
    %cst_30 = arith.constant dense<0.000000e+00> : vector<64x128xf32>
    %55 = tpu.matmul %52, %54, %cst_30 {dimension_numbers = #tpu.dot_dimension_numbers<[1], [0], [0], [1], [0, 0, 1, 1], [], []>} : vector<64x4xbf16>, vector<4x128xbf16>, vector<64x128xf32> -> vector<64x128xf32>
    %56 = arith.addf %50, %55 : vector<64x128xf32>
    %c0_31 = arith.constant 0 : index
    %c0_32 = arith.constant 0 : index
    %57 = vector.load %arg3[%c0_31, %c0_32] : memref<1x128xf32, #tpu.memory_space<vmem>>, vector<1x128xf32>
    %58 = vector.broadcast %57 : vector<1x128xf32> to vector<64x128xf32>
    %59 = arith.addf %56, %58 : vector<64x128xf32>
    %cst_33 = arith.constant 0.000000e+00 : f32
    %60 = vector.broadcast %cst_33 : f32 to vector<64x128xf32>
    %61 = arith.maximumf %59, %60 : vector<64x128xf32>
    %62 = vector.shape_cast %61 : vector<64x128xf32> to vector<8x8x128xf32>
    %c0_34 = arith.constant 0 : index
    %c0_35 = arith.constant 0 : index
    %c0_36 = arith.constant 0 : index
    %c0_37 = arith.constant 0 : index
    %63 = vector.load %arg4[%c0_34, %c0_35, %c0_36, %c0_37] : memref<1x8x8x128xf32, #tpu.memory_space<vmem>>, vector<1x8x8x128xf32>
    %64 = vector.shape_cast %63 : vector<1x8x8x128xf32> to vector<8x8x128xf32>
    %65 = vector.shape_cast %62 : vector<8x8x128xf32> to vector<1x8x8x128xf32>
    tpu.vector_store %arg4[%c0_34, %c0_35, %c0_36, %c0_37], %65 {strides = array<i32>} : memref<1x8x8x128xf32, #tpu.memory_space<vmem>>, vector<1x8x8x128xf32>,
    return
  }
  func.func @transform_0(%arg0: i32) -> (i32, i32, i32, i32) {
    %c0_i32 = arith.constant 0 : i32
    %c0_i32_0 = arith.constant 0 : i32
    %c0_i32_1 = arith.constant 0 : i32
    %c0_i32_2 = arith.constant 0 : i32
    return %arg0, %c0_i32, %c0_i32_0, %c0_i32_1 : i32, i32, i32, i32
  }
  func.func @transform_1(%arg0: i32) -> (i32, i32, i32) {
    %c0_i32 = arith.constant 0 : i32
    %c0_i32_0 = arith.constant 0 : i32
    %c0_i32_1 = arith.constant 0 : i32
    %c0_i32_2 = arith.constant 0 : i32
    return %c0_i32, %c0_i32_0, %c0_i32_1 : i32, i32, i32
  }
  func.func @transform_2(%arg0: i32) -> (i32, i32) {
    %c0_i32 = arith.constant 0 : i32
    %c0_i32_0 = arith.constant 0 : i32
    %c0_i32_1 = arith.constant 0 : i32
    return %c0_i32, %c0_i32_0 : i32, i32
  }
  func.func @transform_3(%arg0: i32) -> (i32, i32, i32, i32) {
    %c0_i32 = arith.constant 0 : i32
    %c0_i32_0 = arith.constant 0 : i32
    %c0_i32_1 = arith.constant 0 : i32
    %c0_i32_2 = arith.constant 0 : i32
    return %arg0, %c0_i32, %c0_i32_0, %c0_i32_1 : i32, i32, i32, i32
  }
}

</mosaic_0001>

<llo_original>
// kernel: sepconv_forward.3
$region0: #{sepconv_forward.3}
  #allocation0 [shape = 'u32[]', space=smem, size = 0x4, offset = 0x4, fixed_abs, tag = 'smem constant byte address 0x4 - core index']
  #allocation1 [shape = 'u32[72,128]{1,0:T(1,128)}', space=vmem, size = 0x9000, scoped, tag = 'internal scratch']
  %s0 = inlined_call_operand.vmem [shape: bf16[2,10,10,4], index: 0, kind: input, shape index: {}]
  %s1 = inlined_call_operand.vmem [shape: bf16[9,4,128], index: 1, kind: input, shape index: {}]
  %s2 = inlined_call_operand.vmem [shape: f32[1,128], index: 2, kind: input, shape index: {}]
  %s3 = inlined_call_operand.vmem [shape: f32[2,8,8,128], index: 3, kind: output, shape index: {}]
  %s4 = sld [smem:[#allocation0]]
  $region45: #{sepconv_forward.3} parent=0
    _
  %s6 = ssub.s32 1, %s4
  %s7 = scalar_select 0, %s6, %s4
  loop: start=0, step=1, limit=4
  $region2: #{sepconv_forward.3} parent=0 // loop_pre_header
    _
  $region3: #{sepconv_forward.3} parent=0 // loop_header
    %s9 = sphi 0, %s13
    %p10 = scmp.ge.s32.totalorder %s9, 4
    %s19 = sphi 0, %s21
    %s22 = sphi 0, %s19
    %s23 = sphi 0, %s22
    %s39 = sphi 0, %s23
    %s43 = sphi 0, %s43
    %s45 = sphi 0, %s43
    %s46 = sphi 0, %s45
    %s60 = sphi 0, %s46
    %s64 = sphi 0, %s64
    %s66 = sphi 0, %s64
    %s67 = sphi 0, %s66
    %s81 = sphi 0, %s67
    %s87 = sphi 0, %s89
    %s90 = sphi 0, %s87
    %s91 = sphi 0, %s90
    %s107 = sphi 0, %s91
  $region4: #{sepconv_forward.3} parent=0 // loop_header_branch
    %12 = sbr.rel (%p10) target = $region8
  $region5: #{sepconv_forward.3} parent=0 // loop_body
    %s14 = ssub.s32 %s9, 1
    %s15 = ssub.s32 %s9, 2
    %s16 = sadd.s32 %s9, 1
    %s17 = ssub.s32 %s9, %s16
    %p18 = scmp.eq.s32.totalorder %s17, 0
    %s20 = sadd.s32 %s19, 1
    %s21 = scalar_select %p18, %s19, %s20
    %p24 = pneg %p18
    %p25 = scmp.eq.s32.totalorder %s9, 1
    %p26 = por %p24, %p25
    %p27 = scmp.ne.s32.totalorder %s19, %s22
    %p28 = scmp.eq.s32.totalorder %s9, 0
    %p29 = por %p27, %p28
    %p30 = scmp.ne.s32.totalorder %s19, %s22
    %p31 = scmp.eq.s32.totalorder %s14, 1
    %p32 = por %p30, %p31
    %p33 = scmp.ne.s32.totalorder %s22, %s23
    %p34 = scmp.eq.s32.totalorder %s14, 0
    %p35 = por %p33, %p34
    %p36 = scmp.ne.s32.totalorder %s22, %s23
    %p37 = scmp.eq.s32.totalorder %s15, 1
    %p38 = por %p36, %p37
    %p40 = scmp.ne.s32.totalorder %s23, %s39
    %p41 = scmp.eq.s32.totalorder %s15, 0
    %p42 = por %p40, %p41
    %s44 = sadd.s32 %s43, 1
    %p47 = scmp.eq.s32.totalorder %s9, 1
    %p48 = scmp.ne.s32.totalorder %s43, %s45
    %p49 = scmp.eq.s32.totalorder %s9, 0
    %p50 = por %p48, %p49
    %p51 = scmp.ne.s32.totalorder %s43, %s45
    %p52 = scmp.eq.s32.totalorder %s14, 1
    %p53 = por %p51, %p52
    %p54 = scmp.ne.s32.totalorder %s45, %s46
    %p55 = scmp.eq.s32.totalorder %s14, 0
    %p56 = por %p54, %p55
    %p57 = scmp.ne.s32.totalorder %s45, %s46
    %p58 = scmp.eq.s32.totalorder %s15, 1
    %p59 = por %p57, %p58
    %p61 = scmp.ne.s32.totalorder %s46, %s60
    %p62 = scmp.eq.s32.totalorder %s15, 0
    %p63 = por %p61, %p62
    %s65 = sadd.s32 %s64, 1
    %p68 = scmp.eq.s32.totalorder %s9, 1
    %p69 = scmp.ne.s32.totalorder %s64, %s66
    %p70 = scmp.eq.s32.totalorder %s9, 0
    %p71 = por %p69, %p70
    %p72 = scmp.ne.s32.totalorder %s64, %s66
    %p73 = scmp.eq.s32.totalorder %s14, 1
    %p74 = por %p72, %p73
    %p75 = scmp.ne.s32.totalorder %s66, %s67
    %p76 = scmp.eq.s32.totalorder %s14, 0
    %p77 = por %p75, %p76
    %p78 = scmp.ne.s32.totalorder %s66, %s67
    %p79 = scmp.eq.s32.totalorder %s15, 1
    %p80 = por %p78, %p79
    %p82 = scmp.ne.s32.totalorder %s67, %s81
    %p83 = scmp.eq.s32.totalorder %s15, 0
    %p84 = por %p82, %p83
    %s85 = ssub.s32 %s9, %s16
    %p86 = scmp.eq.s32.totalorder %s85, 0
    %s88 = sadd.s32 %s87, 1
    %s89 = scalar_select %p86, %s87, %s88
    %p92 = pneg %p86
    %p93 = scmp.eq.s32.totalorder %s9, 1
    %p94 = por %p92, %p93
    %p95 = scmp.ne.s32.totalorder %s87, %s90
    %p96 = scmp.eq.s32.totalorder %s9, 0
    %p97 = por %p95, %p96
    %p98 = scmp.ne.s32.totalorder %s87, %s90
    %p99 = scmp.eq.s32.totalorder %s14, 1
    %p100 = por %p98, %p99
    %p101 = scmp.ne.s32.totalorder %s90, %s91
    %p102 = scmp.eq.s32.totalorder %s14, 0
    %p103 = por %p101, %p102
    %p104 = scmp.ne.s32.totalorder %s90, %s91
    %p105 = scmp.eq.s32.totalorder %s15, 1
    %p106 = por %p104, %p105
    %p108 = scmp.ne.s32.totalorder %s91, %s107
    %p109 = scmp.eq.s32.totalorder %s15, 0
    %p110 = por %p108, %p109
    %p111 = scmp.le.s32.totalorder 1, %s9
    %p112 = scmp.lt.s32.totalorder %s9, 3
    %p113 = pnand %p111, %p112
    %p114 = pneg %p113
    // Predicated region
    $region9: #{sepconv_forward.3} parent=5 // pred_check
      _
    $region10: #{sepconv_forward.3} parent=5 // pred_check_branch
      %116 = sbr.rel (%p113) target = $region12
    $region11: #{sepconv_forward.3} parent=5 // pred_region
      %s117 = ssub.s32 %s9, 1
      // Predicated region
      $region13: #{sepconv_forward.3} parent=11 // pred_check
        %p118 = pneg %p56
      $region14: #{sepconv_forward.3} parent=11 // pred_check_branch
        %120 = sbr.rel (%p118) target = $region16
      $region15: #{sepconv_forward.3} parent=11 // pred_region
        _
      $region16: #{sepconv_forward.3} parent=11 // pred_fallthru
        _
      // Predicated region
      $region17: #{sepconv_forward.3} parent=11 // pred_check
        %p121 = pneg %p77
      $region18: #{sepconv_forward.3} parent=11 // pred_check_branch
        %123 = sbr.rel (%p121) target = $region20
      $region19: #{sepconv_forward.3} parent=11 // pred_region
        _
      $region20: #{sepconv_forward.3} parent=11 // pred_fallthru
        _
    $region12: #{sepconv_forward.3} parent=5 // pred_fallthru
      _
    %p124 = scmp.lt.s32.totalorder %s9, 2
    // Predicated region
    $region21: #{sepconv_forward.3} parent=5 // pred_check
      %p125 = pneg %p124
    $region22: #{sepconv_forward.3} parent=5 // pred_check_branch
      %127 = sbr.rel (%p125) target = $region24
    $region23: #{sepconv_forward.3} parent=5 // pred_region
      // Predicated region
      $region25: #{sepconv_forward.3} parent=23 // pred_check
        %p128 = pneg %p29
      $region26: #{sepconv_forward.3} parent=23 // pred_check_branch
        %130 = sbr.rel (%p128) target = $region28
      $region27: #{sepconv_forward.3} parent=23 // pred_region
        %p131 = scmp.lt.s32.totalorder %s9, 1
        %s132 = scalar_select %p131, %s9, 1
        %s133 = smul.addr %s132, 20
        %s134 = smul.addr %s133, 4
        %s135 = scalar_lea.vmem %s0, %s134
      $region28: #{sepconv_forward.3} parent=23 // pred_fallthru
        _
    $region24: #{sepconv_forward.3} parent=5 // pred_fallthru
      _
    %p136 = scmp.le.s32.totalorder 1, %s9
    %p137 = scmp.lt.s32.totalorder %s9, 3
    %p138 = pnand %p136, %p137
    %p139 = pneg %p138
    // Predicated region
    $region29: #{sepconv_forward.3} parent=5 // pred_check
      _
    $region30: #{sepconv_forward.3} parent=5 // pred_check_branch
      %141 = sbr.rel (%p138) target = $region32
    $region31: #{sepconv_forward.3} parent=5 // pred_region
      %s142 = ssub.s32 %s9, 1
      %p143 = scmp.lt.s32.totalorder %s14, 1
      %s144 = scalar_select %p143, %s14, 1
      %s145 = smul.addr %s144, 20
      %s146 = smul.addr %s145, 4
      %s147 = scalar_lea.vmem %s0, %s146
      %p148 = pneg %p35
      %p149 = pneg %p32
      %p150 = pneg %p56
      %p151 = pneg %p53
      %p152 = pneg %p77
      %p153 = pneg %p74
      %p154 = pneg %p103
      %p155 = pneg %p100
      %p156 = scmp.lt.s32.totalorder %s14, 1
      %s157 = scalar_select %p156, %s14, 1
      %s158 = smul.addr %s157, 8
      %s159 = smul.addr %s158, 8
      %s160 = scalar_lea.vmem %s3, %s159
      %p161 = scmp.lt.s32.totalorder %s14, 1
      %s162 = scalar_select %p161, %s14, 1
      %s163 = smul.addr %s162, 20
      %s164 = smul.addr %s163, 4
      %s165 = scalar_lea.vmem %s0, %s164
      %p166 = scmp.lt.s32.totalorder %s14, 1
      %s167 = scalar_select %p166, %s14, 1
      %s168 = smul.addr %s167, 8
      %s169 = smul.addr %s168, 8
      %s170 = scalar_lea.vmem %s3, %s169
      %v172 = vld [vmem:[%s165] sm:$0xf]
      %v173 = vld [vmem:[%s165 + $0x4] sm:$0x1]
      %v174 = vld [vmem:[%s165 + $0x8] sm:$0xf]
      %v175 = vld [vmem:[%s165 + $0xc] sm:$0x1]
      %v176 = vld [vmem:[%s165 + $0x10] sm:$0xf]
      %v177 = vld [vmem:[%s165 + $0x14] sm:$0x1]
      %v178 = vld [vmem:[%s165 + $0x18] sm:$0xf]
      %v179 = vld [vmem:[%s165 + $0x1c] sm:$0x1]
      %v180 = vld [vmem:[%s165 + $0x20] sm:$0xf]
      %v181 = vld [vmem:[%s165 + $0x24] sm:$0x1]
      %v182 = vld [vmem:[%s165 + $0x28] sm:$0xf]
      %v183 = vld [vmem:[%s165 + $0x2c] sm:$0x1]
      %v184 = vld [vmem:[%s165 + $0x30] sm:$0xf]
      %v185 = vld [vmem:[%s165 + $0x34] sm:$0x1]
      %v186 = vld [vmem:[%s165 + $0x38] sm:$0xf]
      %v187 = vld [vmem:[%s165 + $0x3c] sm:$0x1]
      %v188 = vld [vmem:[%s165 + $0x40] sm:$0xf]
      %v189 = vld [vmem:[%s165 + $0x44] sm:$0x1]
      %v190 = vld [vmem:[%s165 + $0x48] sm:$0xf]
      %v191 = vld [vmem:[%s165 + $0x4c] sm:$0x1]
      %v192 = vld [vmem:[%s1] sm:$0x3]
      %vm193 = vsmask.f32 3328
      %vm194 = vsmask.f32 7440
      %vm195 = vmor %vm193, %vm194
      %v197 = vshrl.u32 %v172, 16
      %v199 = vrot.slane %v197, 4
      %v200 = vshll.u32 %v172, 16
      %v202 = vrot.slane %v200, 5
      %v203 = vor.u32 %v199, %v202
      %v204 = vrot.slane %v203, 4
      %v206 = vshll.u32 %v173, 16
      %v208 = vrot.slane %v206, 5
      %v209 = vsel %vm195, %v204, %v208
      %v211 = vshrl.u32 %v174, 16
      %v213 = vrot.slane %v211, 4
      %v214 = vshll.u32 %v174, 16
      %v216 = vrot.slane %v214, 5
      %v217 = vor.u32 %v213, %v216
      %v218 = vrot.slane %v217, 4
      %v220 = vshll.u32 %v175, 16
      %v222 = vrot.slane %v220, 5
      %v223 = vsel %vm195, %v218, %v222
      %v225 = vshrl.u32 %v176, 16
      %v227 = vrot.slane %v225, 4
      %v228 = vshll.u32 %v176, 16
      %v230 = vrot.slane %v228, 5
      %v231 = vor.u32 %v227, %v230
      %v232 = vrot.slane %v231, 4
      %v234 = vshll.u32 %v177, 16
      %v236 = vrot.slane %v234, 5
      %v237 = vsel %vm195, %v232, %v236
      %v239 = vshrl.u32 %v178, 16
      %v241 = vrot.slane %v239, 4
      %v242 = vshll.u32 %v178, 16
      %v244 = vrot.slane %v242, 5
      %v245 = vor.u32 %v241, %v244
      %v246 = vrot.slane %v245, 4
      %v248 = vshll.u32 %v179, 16
      %v250 = vrot.slane %v248, 5
      %v251 = vsel %vm195, %v246, %v250
      %v253 = vshrl.u32 %v180, 16
      %v255 = vrot.slane %v253, 4
      %v256 = vshll.u32 %v180, 16
      %v258 = vrot.slane %v256, 5
      %v259 = vor.u32 %v255, %v258
      %v260 = vrot.slane %v259, 4
      %v262 = vshll.u32 %v181, 16
      %v264 = vrot.slane %v262, 5
      %v265 = vsel %vm195, %v260, %v264
      %v267 = vshrl.u32 %v182, 16
      %v269 = vrot.slane %v267, 4
      %v270 = vshll.u32 %v182, 16
      %v272 = vrot.slane %v270, 5
      %v273 = vor.u32 %v269, %v272
      %v274 = vrot.slane %v273, 4
      %v276 = vshll.u32 %v183, 16
      %v278 = vrot.slane %v276, 5
      %v279 = vsel %vm195, %v274, %v278
      %v281 = vshrl.u32 %v184, 16
      %v283 = vrot.slane %v281, 4
      %v284 = vshll.u32 %v184, 16
      %v286 = vrot.slane %v284, 5
      %v287 = vor.u32 %v283, %v286
      %v288 = vrot.slane %v287, 4
      %v290 = vshll.u32 %v185, 16
      %v292 = vrot.slane %v290, 5
      %v293 = vsel %vm195, %v288, %v292
      %v295 = vshrl.u32 %v186, 16
      %v297 = vrot.slane %v295, 4
      %v298 = vshll.u32 %v186, 16
      %v300 = vrot.slane %v298, 5
      %v301 = vor.u32 %v297, %v300
      %v302 = vrot.slane %v301, 4
      %v304 = vshll.u32 %v187, 16
      %v306 = vrot.slane %v304, 5
      %v307 = vsel %vm195, %v302, %v306
      %s308 = scalar_lea.vmem %s1, 2
      %v309 = vld [vmem:[%s308] sm:$0x3]
      %v310 = vunpack.c.l.b16 %v209
      %v311 = vunpack.c.l.b16 %v223
      %v312 = vunpack.c.l.b16 %v237
      %v313 = vunpack.c.l.b16 %v251
      %v314 = vunpack.c.l.b16 %v265
      %v315 = vunpack.c.l.b16 %v279
      %v316 = vunpack.c.l.b16 %v293
      %v317 = vunpack.c.l.b16 %v307
      %v318 = vpack.c.b16 %v311, %v310
      %v319 = vpack.c.b16 %v313, %v312
      %v320 = vpack.c.b16 %v315, %v314
      %v321 = vpack.c.b16 %v317, %v316
      %vm322 = vcmask 31744
      %v324 = vsel %vm322, %v318, 0
      %v327 = vsel %vm322, %v319, 0
      %v330 = vsel %vm322, %v320, 0
      %v333 = vsel %vm322, %v321, 0
      %vm335 = vcmask 1041408
      %v337 = vsel %vm335, %v309, 0
      %339 = vmatpush.bf16.msra.mxu0 0
      %340 = vmatpush.bf16.msra.mxu0 0
      %341 = vmatpush.bf16.msra.mxu0 0
      %342 = vmatpush.bf16.msra.mxu0 0
      %343 = vmatpush.bf16.msra.mxu0 0
      %344 = vmatpush.bf16.msra.mxu0 0
      %345 = vmatpush.bf16.msra.mxu0 0
      %346 = vmatpush.bf16.msra.mxu0 %v337
      %347 = vmatmul.bf16.gmra.mxu0 %v324
      %v348 = vpop.f32.mrf.mxu0
      %v349 = vadd.f32 0.0, %v348
      %v350 = vpop.f32.mrf.mxu0
      %v351 = vadd.f32 0.0, %v350
      %352 = vmatmul.bf16.gmra.mxu0 %v327
      %v353 = vpop.f32.mrf.mxu0
      %v354 = vadd.f32 0.0, %v353
      %v355 = vpop.f32.mrf.mxu0
      %v356 = vadd.f32 0.0, %v355
      %357 = vmatmul.bf16.gmra.mxu0 %v330
      %v358 = vpop.f32.mrf.mxu0
      %v359 = vadd.f32 0.0, %v358
      %v360 = vpop.f32.mrf.mxu0
      %v361 = vadd.f32 0.0, %v360
      %362 = vmatmul.bf16.gmra.mxu0 %v333
      %v363 = vpop.f32.mrf.mxu0
      %v364 = vadd.f32 0.0, %v363
      %v365 = vpop.f32.mrf.mxu0
      %v366 = vadd.f32 0.0, %v365
      %367 = vdwg.mxu0
      %v376 = vunpack.c.l.b16 %v172
      %v377 = vunpack.c.l.b16 %v174
      %v378 = vunpack.c.l.b16 %v176
      %v379 = vunpack.c.l.b16 %v178
      %v380 = vunpack.c.l.b16 %v180
      %v381 = vunpack.c.l.b16 %v182
      %v382 = vunpack.c.l.b16 %v184
      %v383 = vunpack.c.l.b16 %v186
      %v384 = vpack.c.b16 %v377, %v376
      %v385 = vpack.c.b16 %v379, %v378
      %v386 = vpack.c.b16 %v381, %v380
      %v387 = vpack.c.b16 %v383, %v382
      %v389 = vsel %vm322, %v384, 0
      %v392 = vsel %vm322, %v385, 0
      %v395 = vsel %vm322, %v386, 0
      %v398 = vsel %vm322, %v387, 0
      %v401 = vsel %vm335, %v192, 0
      %403 = vmatpush.bf16.msra.mxu0 0
      %404 = vmatpush.bf16.msra.mxu0 0
      %405 = vmatpush.bf16.msra.mxu0 0
      %406 = vmatpush.bf16.msra.mxu0 0
      %407 = vmatpush.bf16.msra.mxu0 0
      %408 = vmatpush.bf16.msra.mxu0 0
      %409 = vmatpush.bf16.msra.mxu0 0
      %410 = vmatpush.bf16.msra.mxu0 %v401
      %411 = vmatmul.bf16.gmra.mxu0 %v389
      %v412 = vpop.f32.mrf.mxu0
      %v413 = vadd.f32 %v349, %v412
      %v414 = vpop.f32.mrf.mxu0
      %v415 = vadd.f32 %v351, %v414
      %416 = vmatmul.bf16.gmra.mxu0 %v392
      %v417 = vpop.f32.mrf.mxu0
      %v418 = vadd.f32 %v354, %v417
      %v419 = vpop.f32.mrf.mxu0
      %v420 = vadd.f32 %v356, %v419
      %421 = vmatmul.bf16.gmra.mxu0 %v395
      %v422 = vpop.f32.mrf.mxu0
      %v423 = vadd.f32 %v359, %v422
      %v424 = vpop.f32.mrf.mxu0
      %v425 = vadd.f32 %v361, %v424
      %426 = vmatmul.bf16.gmra.mxu0 %v398
      %v427 = vpop.f32.mrf.mxu0
      %v428 = vadd.f32 %v364, %v427
      %v429 = vpop.f32.mrf.mxu0
      %v430 = vadd.f32 %v366, %v429
      %431 = vdwg.mxu0
      %vm440 = vcmask 1042432
      %vm441 = vcmask 1046532
      %vm442 = vmor %vm440, %vm441
      %v443 = vrot.slane %v172, 5
      %v444 = vrot.slane %v443, 4
      %v445 = vrot.slane %v173, 5
      %v446 = vsel %vm442, %v444, %v445
      %v447 = vrot.slane %v174, 5
      %v448 = vrot.slane %v447, 4
      %v449 = vrot.slane %v175, 5
      %v450 = vsel %vm442, %v448, %v449
      %v451 = vrot.slane %v176, 5
      %v452 = vrot.slane %v451, 4
      %v453 = vrot.slane %v177, 5
      %v454 = vsel %vm442, %v452, %v453
      %v455 = vrot.slane %v178, 5
      %v456 = vrot.slane %v455, 4
      %v457 = vrot.slane %v179, 5
      %v458 = vsel %vm442, %v456, %v457
      %v459 = vrot.slane %v180, 5
      %v460 = vrot.slane %v459, 4
      %v461 = vrot.slane %v181, 5
      %v462 = vsel %vm442, %v460, %v461
      %v463 = vrot.slane %v182, 5
      %v464 = vrot.slane %v463, 4
      %v465 = vrot.slane %v183, 5
      %v466 = vsel %vm442, %v464, %v465
      %v467 = vrot.slane %v184, 5
      %v468 = vrot.slane %v467, 4
      %v469 = vrot.slane %v185, 5
      %v470 = vsel %vm442, %v468, %v469
      %v471 = vrot.slane %v186, 5
      %v472 = vrot.slane %v471, 4
      %v473 = vrot.slane %v187, 5
      %v474 = vsel %vm442, %v472, %v473
      %s475 = scalar_lea.vmem %s1, 4
      %v476 = vld [vmem:[%s475] sm:$0x3]
      %v477 = vunpack.c.l.b16 %v446
      %v478 = vunpack.c.l.b16 %v450
      %v479 = vunpack.c.l.b16 %v454
      %v480 = vunpack.c.l.b16 %v458
      %v481 = vunpack.c.l.b16 %v462
      %v482 = vunpack.c.l.b16 %v466
      %v483 = vunpack.c.l.b16 %v470
      %v484 = vunpack.c.l.b16 %v474
      %v485 = vpack.c.b16 %v478, %v477
      %v486 = vpack.c.b16 %v480, %v479
      %v487 = vpack.c.b16 %v482, %v481
      %v488 = vpack.c.b16 %v484, %v483
      %v490 = vsel %vm322, %v485, 0
      %v493 = vsel %vm322, %v486, 0
      %v496 = vsel %vm322, %v487, 0
      %v499 = vsel %vm322, %v488, 0
      %v502 = vsel %vm335, %v476, 0
      %504 = vmatpush.bf16.msra.mxu0 0
      %505 = vmatpush.bf16.msra.mxu0 0
      %506 = vmatpush.bf16.msra.mxu0 0
      %507 = vmatpush.bf16.msra.mxu0 0
      %508 = vmatpush.bf16.msra.mxu0 0
      %509 = vmatpush.bf16.msra.mxu0 0
      %510 = vmatpush.bf16.msra.mxu0 0
      %511 = vmatpush.bf16.msra.mxu0 %v502
      %512 = vmatmul.bf16.gmra.mxu0 %v490
      %v513 = vpop.f32.mrf.mxu0
      %v514 = vadd.f32 0.0, %v513
      %v515 = vpop.f32.mrf.mxu0
      %v516 = vadd.f32 0.0, %v515
      %517 = vmatmul.bf16.gmra.mxu0 %v493
      %v518 = vpop.f32.mrf.mxu0
      %v519 = vadd.f32 0.0, %v518
      %v520 = vpop.f32.mrf.mxu0
      %v521 = vadd.f32 0.0, %v520
      %522 = vmatmul.bf16.gmra.mxu0 %v496
      %v523 = vpop.f32.mrf.mxu0
      %v524 = vadd.f32 0.0, %v523
      %v525 = vpop.f32.mrf.mxu0
      %v526 = vadd.f32 0.0, %v525
      %527 = vmatmul.bf16.gmra.mxu0 %v499
      %v528 = vpop.f32.mrf.mxu0
      %v529 = vadd.f32 0.0, %v528
      %v530 = vpop.f32.mrf.mxu0
      %v531 = vadd.f32 0.0, %v530
      %532 = vdwg.mxu0
      %v533 = vadd.f32 %v413, %v514
      %v534 = vadd.f32 %v415, %v516
      %v535 = vadd.f32 %v418, %v519
      %v536 = vadd.f32 %v420, %v521
      %v537 = vadd.f32 %v423, %v524
      %v538 = vadd.f32 %v425, %v526
      %v539 = vadd.f32 %v428, %v529
      %v540 = vadd.f32 %v430, %v531
      %s541 = scalar_lea.vmem %s1, 6
      %v542 = vld [vmem:[%s541] sm:$0x3]
      %v544 = vunpack.c.l.b16 %v188
      %v545 = vpack.c.b16 %v378, %v377
      %v546 = vpack.c.b16 %v380, %v379
      %v547 = vpack.c.b16 %v382, %v381
      %v548 = vpack.c.b16 %v544, %v383
      %v550 = vsel %vm322, %v545, 0
      %v553 = vsel %vm322, %v546, 0
      %v556 = vsel %vm322, %v547, 0
      %v559 = vsel %vm322, %v548, 0
      %v562 = vsel %vm335, %v542, 0
      %564 = vmatpush.bf16.msra.mxu0 0
      %565 = vmatpush.bf16.msra.mxu0 0
      %566 = vmatpush.bf16.msra.mxu0 0
      %567 = vmatpush.bf16.msra.mxu0 0
      %568 = vmatpush.bf16.msra.mxu0 0
      %569 = vmatpush.bf16.msra.mxu0 0
      %570 = vmatpush.bf16.msra.mxu0 0
      %571 = vmatpush.bf16.msra.mxu0 %v562
      %572 = vmatmul.bf16.gmra.mxu0 %v550
      %v573 = vpop.f32.mrf.mxu0
      %v574 = vadd.f32 0.0, %v573
      %v575 = vpop.f32.mrf.mxu0
      %v576 = vadd.f32 0.0, %v575
      %577 = vmatmul.bf16.gmra.mxu0 %v553
      %v578 = vpop.f32.mrf.mxu0
      %v579 = vadd.f32 0.0, %v578
      %v580 = vpop.f32.mrf.mxu0
      %v581 = vadd.f32 0.0, %v580
      %582 = vmatmul.bf16.gmra.mxu0 %v556
      %v583 = vpop.f32.mrf.mxu0
      %v584 = vadd.f32 0.0, %v583
      %v585 = vpop.f32.mrf.mxu0
      %v586 = vadd.f32 0.0, %v585
      %587 = vmatmul.bf16.gmra.mxu0 %v559
      %v588 = vpop.f32.mrf.mxu0
      %v589 = vadd.f32 0.0, %v588
      %v590 = vpop.f32.mrf.mxu0
      %v591 = vadd.f32 0.0, %v590
      %592 = vdwg.mxu0
      %v593 = vadd.f32 %v533, %v574
      %v594 = vadd.f32 %v534, %v576
      %v595 = vadd.f32 %v535, %v579
      %v596 = vadd.f32 %v536, %v581
      %v597 = vadd.f32 %v537, %v584
      %v598 = vadd.f32 %v538, %v586
      %v599 = vadd.f32 %v539, %v589
      %v600 = vadd.f32 %v540, %v591
      %v602 = vshrl.u32 %v188, 16
      %v604 = vrot.slane %v602, 4
      %v605 = vshll.u32 %v188, 16
      %v607 = vrot.slane %v605, 5
      %v608 = vor.u32 %v604, %v607
      %v609 = vrot.slane %v608, 4
      %v611 = vshll.u32 %v189, 16
      %v613 = vrot.slane %v611, 5
      %v614 = vsel %vm195, %v609, %v613
      %s615 = scalar_lea.vmem %s1, 8
      %v616 = vld [vmem:[%s615] sm:$0x3]
      %v617 = vunpack.c.l.b16 %v614
      %v618 = vpack.c.b16 %v312, %v311
      %v619 = vpack.c.b16 %v314, %v313
      %v620 = vpack.c.b16 %v316, %v315
      %v621 = vpack.c.b16 %v617, %v317
      %v623 = vsel %vm322, %v618, 0
      %v626 = vsel %vm322, %v619, 0
      %v629 = vsel %vm322, %v620, 0
      %v632 = vsel %vm322, %v621, 0
      %v635 = vsel %vm335, %v616, 0
      %637 = vmatpush.bf16.msra.mxu0 0
      %638 = vmatpush.bf16.msra.mxu0 0
      %639 = vmatpush.bf16.msra.mxu0 0
      %640 = vmatpush.bf16.msra.mxu0 0
      %641 = vmatpush.bf16.msra.mxu0 0
      %642 = vmatpush.bf16.msra.mxu0 0
      %643 = vmatpush.bf16.msra.mxu0 0
      %644 = vmatpush.bf16.msra.mxu0 %v635
      %645 = vmatmul.bf16.gmra.mxu0 %v623
      %v646 = vpop.f32.mrf.mxu0
      %v647 = vadd.f32 0.0, %v646
      %v648 = vpop.f32.mrf.mxu0
      %v649 = vadd.f32 0.0, %v648
      %650 = vmatmul.bf16.gmra.mxu0 %v626
      %v651 = vpop.f32.mrf.mxu0
      %v652 = vadd.f32 0.0, %v651
      %v653 = vpop.f32.mrf.mxu0
      %v654 = vadd.f32 0.0, %v653
      %655 = vmatmul.bf16.gmra.mxu0 %v629
      %v656 = vpop.f32.mrf.mxu0
      %v657 = vadd.f32 0.0, %v656
      %v658 = vpop.f32.mrf.mxu0
      %v659 = vadd.f32 0.0, %v658
      %660 = vmatmul.bf16.gmra.mxu0 %v632
      %v661 = vpop.f32.mrf.mxu0
      %v662 = vadd.f32 0.0, %v661
      %v663 = vpop.f32.mrf.mxu0
      %v664 = vadd.f32 0.0, %v663
      %665 = vdwg.mxu0
      %v666 = vadd.f32 %v593, %v647
      %v667 = vadd.f32 %v594, %v649
      %v668 = vadd.f32 %v595, %v652
      %v669 = vadd.f32 %v596, %v654
      %v670 = vadd.f32 %v597, %v657
      %v671 = vadd.f32 %v598, %v659
      %v672 = vadd.f32 %v599, %v662
      %v673 = vadd.f32 %v600, %v664
      %v675 = vrot.slane %v188, 5
      %v676 = vrot.slane %v675, 4
      %v677 = vrot.slane %v189, 5
      %v678 = vsel %vm442, %v676, %v677
      %s679 = scalar_lea.vmem %s1, 10
      %v680 = vld [vmem:[%s679] sm:$0x3]
      %v681 = vunpack.c.l.b16 %v678
      %v682 = vpack.c.b16 %v479, %v478
      %v683 = vpack.c.b16 %v481, %v480
      %v684 = vpack.c.b16 %v483, %v482
      %v685 = vpack.c.b16 %v681, %v484
      %v687 = vsel %vm322, %v682, 0
      %v690 = vsel %vm322, %v683, 0
      %v693 = vsel %vm322, %v684, 0
      %v696 = vsel %vm322, %v685, 0
      %v699 = vsel %vm335, %v680, 0
      %701 = vmatpush.bf16.msra.mxu0 0
      %702 = vmatpush.bf16.msra.mxu0 0
      %703 = vmatpush.bf16.msra.mxu0 0
      %704 = vmatpush.bf16.msra.mxu0 0
      %705 = vmatpush.bf16.msra.mxu0 0
      %706 = vmatpush.bf16.msra.mxu0 0
      %707 = vmatpush.bf16.msra.mxu0 0
      %708 = vmatpush.bf16.msra.mxu0 %v699
      %709 = vmatmul.bf16.gmra.mxu0 %v687
      %v710 = vpop.f32.mrf.mxu0
      %v711 = vadd.f32 0.0, %v710
      %v712 = vpop.f32.mrf.mxu0
      %v713 = vadd.f32 0.0, %v712
      %714 = vmatmul.bf16.gmra.mxu0 %v690
      %v715 = vpop.f32.mrf.mxu0
      %v716 = vadd.f32 0.0, %v715
      %v717 = vpop.f32.mrf.mxu0
      %v718 = vadd.f32 0.0, %v717
      %719 = vmatmul.bf16.gmra.mxu0 %v693
      %v720 = vpop.f32.mrf.mxu0
      %v721 = vadd.f32 0.0, %v720
      %v722 = vpop.f32.mrf.mxu0
      %v723 = vadd.f32 0.0, %v722
      %724 = vmatmul.bf16.gmra.mxu0 %v696
      %v725 = vpop.f32.mrf.mxu0
      %v726 = vadd.f32 0.0, %v725
      %v727 = vpop.f32.mrf.mxu0
      %v728 = vadd.f32 0.0, %v727
      %729 = vdwg.mxu0
      %v730 = vadd.f32 %v666, %v711
      %v731 = vadd.f32 %v667, %v713
      %v732 = vadd.f32 %v668, %v716
      %v733 = vadd.f32 %v669, %v718
      %v734 = vadd.f32 %v670, %v721
      %v735 = vadd.f32 %v671, %v723
      %v736 = vadd.f32 %v672, %v726
      %v737 = vadd.f32 %v673, %v728
      %s738 = scalar_lea.vmem %s1, 12
      %v739 = vld [vmem:[%s738] sm:$0x3]
      %v741 = vunpack.c.l.b16 %v190
      %v742 = vpack.c.b16 %v741, %v544
      %v744 = vsel %vm322, %v742, 0
      %v747 = vsel %vm335, %v739, 0
      %749 = vmatpush.bf16.msra.mxu0 0
      %750 = vmatpush.bf16.msra.mxu0 0
      %751 = vmatpush.bf16.msra.mxu0 0
      %752 = vmatpush.bf16.msra.mxu0 0
      %753 = vmatpush.bf16.msra.mxu0 0
      %754 = vmatpush.bf16.msra.mxu0 0
      %755 = vmatpush.bf16.msra.mxu0 0
      %756 = vmatpush.bf16.msra.mxu0 %v747
      %757 = vmatmul.bf16.gmra.mxu0 %v392
      %v758 = vpop.f32.mrf.mxu0
      %v759 = vadd.f32 0.0, %v758
      %v760 = vpop.f32.mrf.mxu0
      %v761 = vadd.f32 0.0, %v760
      %762 = vmatmul.bf16.gmra.mxu0 %v395
      %v763 = vpop.f32.mrf.mxu0
      %v764 = vadd.f32 0.0, %v763
      %v765 = vpop.f32.mrf.mxu0
      %v766 = vadd.f32 0.0, %v765
      %767 = vmatmul.bf16.gmra.mxu0 %v398
      %v768 = vpop.f32.mrf.mxu0
      %v769 = vadd.f32 0.0, %v768
      %v770 = vpop.f32.mrf.mxu0
      %v771 = vadd.f32 0.0, %v770
      %772 = vmatmul.bf16.gmra.mxu0 %v744
      %v773 = vpop.f32.mrf.mxu0
      %v774 = vadd.f32 0.0, %v773
      %v775 = vpop.f32.mrf.mxu0
      %v776 = vadd.f32 0.0, %v775
      %777 = vdwg.mxu0
      %v778 = vadd.f32 %v730, %v759
      %v779 = vadd.f32 %v731, %v761
      %v780 = vadd.f32 %v732, %v764
      %v781 = vadd.f32 %v733, %v766
      %v782 = vadd.f32 %v734, %v769
      %v783 = vadd.f32 %v735, %v771
      %v784 = vadd.f32 %v736, %v774
      %v785 = vadd.f32 %v737, %v776
      %v787 = vshrl.u32 %v190, 16
      %v789 = vrot.slane %v787, 4
      %v790 = vshll.u32 %v190, 16
      %v792 = vrot.slane %v790, 5
      %v793 = vor.u32 %v789, %v792
      %v794 = vrot.slane %v793, 4
      %v796 = vshll.u32 %v191, 16
      %v798 = vrot.slane %v796, 5
      %v799 = vsel %vm195, %v794, %v798
      %s800 = scalar_lea.vmem %s1, 14
      %v801 = vld [vmem:[%s800] sm:$0x3]
      %v802 = vunpack.c.l.b16 %v799
      %v803 = vpack.c.b16 %v802, %v617
      %v805 = vsel %vm322, %v803, 0
      %v808 = vsel %vm335, %v801, 0
      %810 = vmatpush.bf16.msra.mxu0 0
      %811 = vmatpush.bf16.msra.mxu0 0
      %812 = vmatpush.bf16.msra.mxu0 0
      %813 = vmatpush.bf16.msra.mxu0 0
      %814 = vmatpush.bf16.msra.mxu0 0
      %815 = vmatpush.bf16.msra.mxu0 0
      %816 = vmatpush.bf16.msra.mxu0 0
      %817 = vmatpush.bf16.msra.mxu0 %v808
      %818 = vmatmul.bf16.gmra.mxu0 %v327
      %v819 = vpop.f32.mrf.mxu0
      %v820 = vadd.f32 0.0, %v819
      %v821 = vpop.f32.mrf.mxu0
      %v822 = vadd.f32 0.0, %v821
      %823 = vmatmul.bf16.gmra.mxu0 %v330
      %v824 = vpop.f32.mrf.mxu0
      %v825 = vadd.f32 0.0, %v824
      %v826 = vpop.f32.mrf.mxu0
      %v827 = vadd.f32 0.0, %v826
      %828 = vmatmul.bf16.gmra.mxu0 %v333
      %v829 = vpop.f32.mrf.mxu0
      %v830 = vadd.f32 0.0, %v829
      %v831 = vpop.f32.mrf.mxu0
      %v832 = vadd.f32 0.0, %v831
      %833 = vmatmul.bf16.gmra.mxu0 %v805
      %v834 = vpop.f32.mrf.mxu0
      %v835 = vadd.f32 0.0, %v834
      %v836 = vpop.f32.mrf.mxu0
      %v837 = vadd.f32 0.0, %v836
      %838 = vdwg.mxu0
      %v839 = vadd.f32 %v778, %v820
      %v840 = vadd.f32 %v779, %v822
      %v841 = vadd.f32 %v780, %v825
      %v842 = vadd.f32 %v781, %v827
      %v843 = vadd.f32 %v782, %v830
      %v844 = vadd.f32 %v783, %v832
      %v845 = vadd.f32 %v784, %v835
      %v846 = vadd.f32 %v785, %v837
      %v848 = vrot.slane %v190, 5
      %v849 = vrot.slane %v848, 4
      %v850 = vrot.slane %v191, 5
      %v851 = vsel %vm442, %v849, %v850
      %s852 = scalar_lea.vmem %s1, 16
      %v853 = vld [vmem:[%s852] sm:$0x3]
      %v854 = vunpack.c.l.b16 %v851
      %v855 = vpack.c.b16 %v854, %v681
      %v857 = vsel %vm322, %v855, 0
      %v860 = vsel %vm335, %v853, 0
      %862 = vmatpush.bf16.msra.mxu0 0
      %863 = vmatpush.bf16.msra.mxu0 0
      %864 = vmatpush.bf16.msra.mxu0 0
      %865 = vmatpush.bf16.msra.mxu0 0
      %866 = vmatpush.bf16.msra.mxu0 0
      %867 = vmatpush.bf16.msra.mxu0 0
      %868 = vmatpush.bf16.msra.mxu0 0
      %869 = vmatpush.bf16.msra.mxu0 %v860
      %870 = vmatmul.bf16.gmra.mxu0 %v493
      %v871 = vpop.f32.mrf.mxu0
      %v872 = vadd.f32 0.0, %v871
      %v873 = vpop.f32.mrf.mxu0
      %v874 = vadd.f32 0.0, %v873
      %875 = vmatmul.bf16.gmra.mxu0 %v496
      %v876 = vpop.f32.mrf.mxu0
      %v877 = vadd.f32 0.0, %v876
      %v878 = vpop.f32.mrf.mxu0
      %v879 = vadd.f32 0.0, %v878
      %880 = vmatmul.bf16.gmra.mxu0 %v499
      %v881 = vpop.f32.mrf.mxu0
      %v882 = vadd.f32 0.0, %v881
      %v883 = vpop.f32.mrf.mxu0
      %v884 = vadd.f32 0.0, %v883
      %885 = vmatmul.bf16.gmra.mxu0 %v857
      %v886 = vpop.f32.mrf.mxu0
      %v887 = vadd.f32 0.0, %v886
      %v888 = vpop.f32.mrf.mxu0
      %v889 = vadd.f32 0.0, %v888
      %890 = vdwg.mxu0
      %v891 = vadd.f32 %v839, %v872
      %v892 = vadd.f32 %v840, %v874
      %v893 = vadd.f32 %v841, %v877
      %v894 = vadd.f32 %v842, %v879
      %v895 = vadd.f32 %v843, %v882
      %v896 = vadd.f32 %v844, %v884
      %v897 = vadd.f32 %v845, %v887
      %v898 = vadd.f32 %v846, %v889
      %v899 = vld [vmem:[%s2] sm:$0x1]
      %v901 = vperm.slane %v899, 0
      %v903 = vadd.f32 %v891, %v901
      %v904 = vadd.f32 %v892, %v901
      %v905 = vadd.f32 %v893, %v901
      %v906 = vadd.f32 %v894, %v901
      %v907 = vadd.f32 %v895, %v901
      %v908 = vadd.f32 %v896, %v901
      %v909 = vadd.f32 %v897, %v901
      %v910 = vadd.f32 %v898, %v901
      %v911 = vmax.f32 %v903, 0.0
      %v912 = vmax.f32 %v904, 0.0
      %v913 = vmax.f32 %v905, 0.0
      %v914 = vmax.f32 %v906, 0.0
      %v915 = vmax.f32 %v907, 0.0
      %v916 = vmax.f32 %v908, 0.0
      %v917 = vmax.f32 %v909, 0.0
      %v918 = vmax.f32 %v910, 0.0
      %919 = vst [vmem:[%s170] sm:$0xff] %v911
      %920 = vst [vmem:[%s170 + $0x8] sm:$0xff] %v912
      %921 = vst [vmem:[%s170 + $0x10] sm:$0xff] %v913
      %922 = vst [vmem:[%s170 + $0x18] sm:$0xff] %v914
      %923 = vst [vmem:[%s170 + $0x20] sm:$0xff] %v915
      %924 = vst [vmem:[%s170 + $0x28] sm:$0xff] %v916
      %925 = vst [vmem:[%s170 + $0x30] sm:$0xff] %v917
      %926 = vst [vmem:[%s170 + $0x38] sm:$0xff] %v918
      %p927 = scmp.lt.s32.totalorder %s14, 1
      %s928 = scalar_select %p927, %s14, 1
      %s929 = smul.addr %s928, 8
      %s930 = smul.addr %s929, 8
      %s931 = scalar_lea.vmem %s3, %s930
      // Predicated region
      $region33: #{sepconv_forward.3} parent=31 // pred_check
        %p932 = pneg %p100
      $region34: #{sepconv_forward.3} parent=31 // pred_check_branch
        %934 = sbr.rel (%p932) target = $region36
      $region35: #{sepconv_forward.3} parent=31 // pred_region
        _
      $region36: #{sepconv_forward.3} parent=31 // pred_fallthru
        _
    $region32: #{sepconv_forward.3} parent=5 // pred_fallthru
      _
    %p935 = scmp.le.s32.totalorder 2, %s9
    // Predicated region
    $region37: #{sepconv_forward.3} parent=5 // pred_check
      %p936 = pneg %p935
    $region38: #{sepconv_forward.3} parent=5 // pred_check_branch
      %938 = sbr.rel (%p936) target = $region40
    $region39: #{sepconv_forward.3} parent=5 // pred_region
      %s939 = ssub.s32 %s9, 2
      // Predicated region
      $region41: #{sepconv_forward.3} parent=39 // pred_check
        %p940 = pneg %p106
      $region42: #{sepconv_forward.3} parent=39 // pred_check_branch
        %942 = sbr.rel (%p940) target = $region44
      $region43: #{sepconv_forward.3} parent=39 // pred_region
        %p943 = scmp.lt.s32.totalorder %s15, 1
        %s944 = scalar_select %p943, %s15, 1
        %s945 = smul.addr %s944, 8
        %s946 = smul.addr %s945, 8
        %s947 = scalar_lea.vmem %s3, %s946
      $region44: #{sepconv_forward.3} parent=39 // pred_fallthru
        _
    $region40: #{sepconv_forward.3} parent=5 // pred_fallthru
      _
  $region6: #{sepconv_forward.3} parent=0 // loop_footer
    %s13 = sadd.s32 1, %s9
  $region7: #{sepconv_forward.3} parent=0 // loop_footer_branch
    %8 = sbr.rel target = $region3
  $region8: #{sepconv_forward.3} parent=0 // loop_exit
    _

// kernel: sepconv_forward.2
$region0: #{sepconv_forward.2}
  #allocation0 [shape = 'u32[]', space=smem, size = 0x4, offset = 0x4, fixed_abs, tag = 'smem constant byte address 0x4 - core index']
  #allocation1 [shape = 'u32[72,128]{1,0:T(1,128)}', space=vmem, size = 0x9000, scoped, tag = 'internal scratch']
  %s0 = inlined_call_operand.vmem [shape: bf16[2,36,9,4], index: 0, kind: input, shape index: {}]
  %s1 = inlined_call_operand.vmem [shape: bf16[9,4,128], index: 1, kind: input, shape index: {}]
  %s2 = inlined_call_operand.vmem [shape: f32[1,128], index: 2, kind: input, shape index: {}]
  %s3 = inlined_call_operand.vmem [shape: bf16[2,8,8,128], index: 3, kind: output, shape index: {}]
  %s4 = sld [smem:[#allocation0]]
  $region45: #{sepconv_forward.2} parent=0
    _
  %s6 = ssub.s32 1, %s4
  %s7 = scalar_select 0, %s6, %s4
  loop: start=0, step=1, limit=4
  $region2: #{sepconv_forward.2} parent=0 // loop_pre_header
    _
  $region3: #{sepconv_forward.2} parent=0 // loop_header
    %s9 = sphi 0, %s13
    %p10 = scmp.ge.s32.totalorder %s9, 4
    %s19 = sphi 0, %s21
    %s22 = sphi 0, %s19
    %s23 = sphi 0, %s22
    %s39 = sphi 0, %s23
    %s43 = sphi 0, %s43
    %s45 = sphi 0, %s43
    %s46 = sphi 0, %s45
    %s60 = sphi 0, %s46
    %s64 = sphi 0, %s64
    %s66 = sphi 0, %s64
    %s67 = sphi 0, %s66
    %s81 = sphi 0, %s67
    %s87 = sphi 0, %s89
    %s90 = sphi 0, %s87
    %s91 = sphi 0, %s90
    %s107 = sphi 0, %s91
  $region4: #{sepconv_forward.2} parent=0 // loop_header_branch
    %12 = sbr.rel (%p10) target = $region8
  $region5: #{sepconv_forward.2} parent=0 // loop_body
    %s14 = ssub.s32 %s9, 1
    %s15 = ssub.s32 %s9, 2
    %s16 = sadd.s32 %s9, 1
    %s17 = ssub.s32 %s9, %s16
    %p18 = scmp.eq.s32.totalorder %s17, 0
    %s20 = sadd.s32 %s19, 1
    %s21 = scalar_select %p18, %s19, %s20
    %p24 = pneg %p18
    %p25 = scmp.eq.s32.totalorder %s9, 1
    %p26 = por %p24, %p25
    %p27 = scmp.ne.s32.totalorder %s19, %s22
    %p28 = scmp.eq.s32.totalorder %s9, 0
    %p29 = por %p27, %p28
    %p30 = scmp.ne.s32.totalorder %s19, %s22
    %p31 = scmp.eq.s32.totalorder %s14, 1
    %p32 = por %p30, %p31
    %p33 = scmp.ne.s32.totalorder %s22, %s23
    %p34 = scmp.eq.s32.totalorder %s14, 0
    %p35 = por %p33, %p34
    %p36 = scmp.ne.s32.totalorder %s22, %s23
    %p37 = scmp.eq.s32.totalorder %s15, 1
    %p38 = por %p36, %p37
    %p40 = scmp.ne.s32.totalorder %s23, %s39
    %p41 = scmp.eq.s32.totalorder %s15, 0
    %p42 = por %p40, %p41
    %s44 = sadd.s32 %s43, 1
    %p47 = scmp.eq.s32.totalorder %s9, 1
    %p48 = scmp.ne.s32.totalorder %s43, %s45
    %p49 = scmp.eq.s32.totalorder %s9, 0
    %p50 = por %p48, %p49
    %p51 = scmp.ne.s32.totalorder %s43, %s45
    %p52 = scmp.eq.s32.totalorder %s14, 1
    %p53 = por %p51, %p52
    %p54 = scmp.ne.s32.totalorder %s45, %s46
    %p55 = scmp.eq.s32.totalorder %s14, 0
    %p56 = por %p54, %p55
    %p57 = scmp.ne.s32.totalorder %s45, %s46
    %p58 = scmp.eq.s32.totalorder %s15, 1
    %p59 = por %p57, %p58
    %p61 = scmp.ne.s32.totalorder %s46, %s60
    %p62 = scmp.eq.s32.totalorder %s15, 0
    %p63 = por %p61, %p62
    %s65 = sadd.s32 %s64, 1
    %p68 = scmp.eq.s32.totalorder %s9, 1
    %p69 = scmp.ne.s32.totalorder %s64, %s66
    %p70 = scmp.eq.s32.totalorder %s9, 0
    %p71 = por %p69, %p70
    %p72 = scmp.ne.s32.totalorder %s64, %s66
    %p73 = scmp.eq.s32.totalorder %s14, 1
    %p74 = por %p72, %p73
    %p75 = scmp.ne.s32.totalorder %s66, %s67
    %p76 = scmp.eq.s32.totalorder %s14, 0
    %p77 = por %p75, %p76
    %p78 = scmp.ne.s32.totalorder %s66, %s67
    %p79 = scmp.eq.s32.totalorder %s15, 1
    %p80 = por %p78, %p79
    %p82 = scmp.ne.s32.totalorder %s67, %s81
    %p83 = scmp.eq.s32.totalorder %s15, 0
    %p84 = por %p82, %p83
    %s85 = ssub.s32 %s9, %s16
    %p86 = scmp.eq.s32.totalorder %s85, 0
    %s88 = sadd.s32 %s87, 1
    %s89 = scalar_select %p86, %s87, %s88
    %p92 = pneg %p86
    %p93 = scmp.eq.s32.totalorder %s9, 1
    %p94 = por %p92, %p93
    %p95 = scmp.ne.s32.totalorder %s87, %s90
    %p96 = scmp.eq.s32.totalorder %s9, 0
    %p97 = por %p95, %p96
    %p98 = scmp.ne.s32.totalorder %s87, %s90
    %p99 = scmp.eq.s32.totalorder %s14, 1
    %p100 = por %p98, %p99
    %p101 = scmp.ne.s32.totalorder %s90, %s91
    %p102 = scmp.eq.s32.totalorder %s14, 0
    %p103 = por %p101, %p102
    %p104 = scmp.ne.s32.totalorder %s90, %s91
    %p105 = scmp.eq.s32.totalorder %s15, 1
    %p106 = por %p104, %p105
    %p108 = scmp.ne.s32.totalorder %s91, %s107
    %p109 = scmp.eq.s32.totalorder %s15, 0
    %p110 = por %p108, %p109
    %p111 = scmp.le.s32.totalorder 1, %s9
    %p112 = scmp.lt.s32.totalorder %s9, 3
    %p113 = pnand %p111, %p112
    %p114 = pneg %p113
    // Predicated region
    $region9: #{sepconv_forward.2} parent=5 // pred_check
      _
    $region10: #{sepconv_forward.2} parent=5 // pred_check_branch
      %116 = sbr.rel (%p113) target = $region12
    $region11: #{sepconv_forward.2} parent=5 // pred_region
      %s117 = ssub.s32 %s9, 1
      // Predicated region
      $region13: #{sepconv_forward.2} parent=11 // pred_check
        %p118 = pneg %p56
      $region14: #{sepconv_forward.2} parent=11 // pred_check_branch
        %120 = sbr.rel (%p118) target = $region16
      $region15: #{sepconv_forward.2} parent=11 // pred_region
        _
      $region16: #{sepconv_forward.2} parent=11 // pred_fallthru
        _
      // Predicated region
      $region17: #{sepconv_forward.2} parent=11 // pred_check
        %p121 = pneg %p77
      $region18: #{sepconv_forward.2} parent=11 // pred_check_branch
        %123 = sbr.rel (%p121) target = $region20
      $region19: #{sepconv_forward.2} parent=11 // pred_region
        _
      $region20: #{sepconv_forward.2} parent=11 // pred_fallthru
        _
    $region12: #{sepconv_forward.2} parent=5 // pred_fallthru
      _
    %p124 = scmp.lt.s32.totalorder %s9, 2
    // Predicated region
    $region21: #{sepconv_forward.2} parent=5 // pred_check
      %p125 = pneg %p124
    $region22: #{sepconv_forward.2} parent=5 // pred_check_branch
      %127 = sbr.rel (%p125) target = $region24
    $region23: #{sepconv_forward.2} parent=5 // pred_region
      // Predicated region
      $region25: #{sepconv_forward.2} parent=23 // pred_check
        %p128 = pneg %p29
      $region26: #{sepconv_forward.2} parent=23 // pred_check_branch
        %130 = sbr.rel (%p128) target = $region28
      $region27: #{sepconv_forward.2} parent=23 // pred_region
        %p131 = scmp.lt.s32.totalorder %s9, 1
        %s132 = scalar_select %p131, %s9, 1
        %s133 = smul.addr %s132, 72
        %s134 = smul.addr %s133, 4
        %s135 = scalar_lea.vmem %s0, %s134
      $region28: #{sepconv_forward.2} parent=23 // pred_fallthru
        _
    $region24: #{sepconv_forward.2} parent=5 // pred_fallthru
      _
    %p136 = scmp.le.s32.totalorder 1, %s9
    %p137 = scmp.lt.s32.totalorder %s9, 3
    %p138 = pnand %p136, %p137
    %p139 = pneg %p138
    // Predicated region
    $region29: #{sepconv_forward.2} parent=5 // pred_check
      _
    $region30: #{sepconv_forward.2} parent=5 // pred_check_branch
      %141 = sbr.rel (%p138) target = $region32
    $region31: #{sepconv_forward.2} parent=5 // pred_region
      %s142 = ssub.s32 %s9, 1
      %p143 = scmp.lt.s32.totalorder %s14, 1
      %s144 = scalar_select %p143, %s14, 1
      %s145 = smul.addr %s144, 72
      %s146 = smul.addr %s145, 4
      %s147 = scalar_lea.vmem %s0, %s146
      %p148 = pneg %p35
      %p149 = pneg %p32
      %p150 = pneg %p56
      %p151 = pneg %p53
      %p152 = pneg %p77
      %p153 = pneg %p74
      %p154 = pneg %p103
      %p155 = pneg %p100
      %p156 = scmp.lt.s32.totalorder %s14, 1
      %s157 = scalar_select %p156, %s14, 1
      %s158 = smul.addr %s157, 8
      %s159 = smul.addr %s158, 4
      %s160 = scalar_lea.vmem %s3, %s159
      %p161 = scmp.lt.s32.totalorder %s14, 1
      %s162 = scalar_select %p161, %s14, 1
      %s163 = smul.addr %s162, 72
      %s164 = smul.addr %s163, 4
      %s165 = scalar_lea.vmem %s0, %s164
      %p166 = scmp.lt.s32.totalorder %s14, 1
      %s167 = scalar_select %p166, %s14, 1
      %s168 = smul.addr %s167, 8
      %s169 = smul.addr %s168, 4
      %s170 = scalar_lea.vmem %s3, %s169
      %v172 = vld [vmem:[%s165] sm:$0xf]
      %v173 = vld [vmem:[%s165 + $0x4] sm:$0x1]
      %v174 = vld [vmem:[%s165 + $0x8] sm:$0xf]
      %v175 = vld [vmem:[%s165 + $0xc] sm:$0x1]
      %v176 = vld [vmem:[%s165 + $0x10] sm:$0xf]
      %v177 = vld [vmem:[%s165 + $0x14] sm:$0x1]
      %v178 = vld [vmem:[%s165 + $0x18] sm:$0xf]
      %v179 = vld [vmem:[%s165 + $0x1c] sm:$0x1]
      %v180 = vld [vmem:[%s165 + $0x20] sm:$0xf]
      %v181 = vld [vmem:[%s165 + $0x24] sm:$0x1]
      %v182 = vld [vmem:[%s165 + $0x28] sm:$0xf]
      %v183 = vld [vmem:[%s165 + $0x2c] sm:$0x1]
      %v184 = vld [vmem:[%s165 + $0x30] sm:$0xf]
      %v185 = vld [vmem:[%s165 + $0x34] sm:$0x1]
      %v186 = vld [vmem:[%s165 + $0x38] sm:$0xf]
      %v187 = vld [vmem:[%s165 + $0x3c] sm:$0x1]
      %v188 = vld [vmem:[%s165 + $0x40] sm:$0xf]
      %v189 = vld [vmem:[%s165 + $0x44] sm:$0x1]
      %v190 = vld [vmem:[%s165 + $0x48] sm:$0xf]
      %v191 = vld [vmem:[%s165 + $0x50] sm:$0xf]
      %v192 = vld [vmem:[%s165 + $0x58] sm:$0xf]
      %v193 = vld [vmem:[%s165 + $0x60] sm:$0xf]
      %v194 = vld [vmem:[%s165 + $0x68] sm:$0xf]
      %v195 = vld [vmem:[%s165 + $0x70] sm:$0xf]
      %v196 = vld [vmem:[%s165 + $0x78] sm:$0xf]
      %v197 = vld [vmem:[%s165 + $0x80] sm:$0xf]
      %v198 = vld [vmem:[%s165 + $0x88] sm:$0xf]
      %v199 = vld [vmem:[%s165 + $0x90] sm:$0xf]
      %v200 = vld [vmem:[%s165 + $0x94] sm:$0x1]
      %v201 = vld [vmem:[%s165 + $0x98] sm:$0xf]
      %v202 = vld [vmem:[%s165 + $0x9c] sm:$0x1]
      %v203 = vld [vmem:[%s165 + $0xa0] sm:$0xf]
      %v204 = vld [vmem:[%s165 + $0xa4] sm:$0x1]
      %v205 = vld [vmem:[%s165 + $0xa8] sm:$0xf]
      %v206 = vld [vmem:[%s165 + $0xac] sm:$0x1]
      %v207 = vld [vmem:[%s165 + $0xb0] sm:$0xf]
      %v208 = vld [vmem:[%s165 + $0xb4] sm:$0x1]
      %v209 = vld [vmem:[%s165 + $0xb8] sm:$0xf]
      %v210 = vld [vmem:[%s165 + $0xbc] sm:$0x1]
      %v211 = vld [vmem:[%s165 + $0xc0] sm:$0xf]
      %v212 = vld [vmem:[%s165 + $0xc4] sm:$0x1]
      %v213 = vld [vmem:[%s165 + $0xc8] sm:$0xf]
      %v214 = vld [vmem:[%s165 + $0xcc] sm:$0x1]
      %v215 = vld [vmem:[%s165 + $0xd8] sm:$0xf]
      %v216 = vld [vmem:[%s165 + $0xe0] sm:$0xf]
      %v217 = vld [vmem:[%s165 + $0xe8] sm:$0xf]
      %v218 = vld [vmem:[%s165 + $0xf0] sm:$0xf]
      %v219 = vld [vmem:[%s165 + $0xf8] sm:$0xf]
      %v220 = vld [vmem:[%s165 + $0x100] sm:$0xf]
      %v221 = vld [vmem:[%s165 + $0x108] sm:$0xf]
      %v222 = vld [vmem:[%s165 + $0x110] sm:$0xf]
      %v223 = vld [vmem:[%s1] sm:$0x3]
      %s224 = scalar_lea.vmem %s1, 2
      %v225 = vld [vmem:[%s224] sm:$0x3]
      %v234 = vunpack.c.l.b16 %v190
      %v235 = vunpack.c.l.b16 %v191
      %v236 = vunpack.c.l.b16 %v192
      %v237 = vunpack.c.l.b16 %v193
      %v238 = vunpack.c.l.b16 %v194
      %v239 = vunpack.c.l.b16 %v195
      %v240 = vunpack.c.l.b16 %v196
      %v241 = vunpack.c.l.b16 %v197
      %v242 = vpack.c.b16 %v235, %v234
      %v243 = vpack.c.b16 %v237, %v236
      %v244 = vpack.c.b16 %v239, %v238
      %v245 = vpack.c.b16 %v241, %v240
      %vm246 = vcmask 31744
      %v248 = vsel %vm246, %v242, 0
      %v251 = vsel %vm246, %v243, 0
      %v254 = vsel %vm246, %v244, 0
      %v257 = vsel %vm246, %v245, 0
      %vm259 = vcmask 1041408
      %v261 = vsel %vm259, %v225, 0
      %263 = vmatpush.bf16.msra.mxu0 0
      %264 = vmatpush.bf16.msra.mxu0 0
      %265 = vmatpush.bf16.msra.mxu0 0
      %266 = vmatpush.bf16.msra.mxu0 0
      %267 = vmatpush.bf16.msra.mxu0 0
      %268 = vmatpush.bf16.msra.mxu0 0
      %269 = vmatpush.bf16.msra.mxu0 0
      %270 = vmatpush.bf16.msra.mxu0 %v261
      %271 = vmatmul.bf16.gmra.mxu0 %v248
      %v272 = vpop.f32.mrf.mxu0
      %v273 = vadd.f32 0.0, %v272
      %v274 = vpop.f32.mrf.mxu0
      %v275 = vadd.f32 0.0, %v274
      %276 = vmatmul.bf16.gmra.mxu0 %v251
      %v277 = vpop.f32.mrf.mxu0
      %v278 = vadd.f32 0.0, %v277
      %v279 = vpop.f32.mrf.mxu0
      %v280 = vadd.f32 0.0, %v279
      %281 = vmatmul.bf16.gmra.mxu0 %v254
      %v282 = vpop.f32.mrf.mxu0
      %v283 = vadd.f32 0.0, %v282
      %v284 = vpop.f32.mrf.mxu0
      %v285 = vadd.f32 0.0, %v284
      %286 = vmatmul.bf16.gmra.mxu0 %v257
      %v287 = vpop.f32.mrf.mxu0
      %v288 = vadd.f32 0.0, %v287
      %v289 = vpop.f32.mrf.mxu0
      %v290 = vadd.f32 0.0, %v289
      %291 = vdwg.mxu0
      %v300 = vunpack.c.l.b16 %v172
      %v301 = vunpack.c.l.b16 %v174
      %v302 = vunpack.c.l.b16 %v176
      %v303 = vunpack.c.l.b16 %v178
      %v304 = vunpack.c.l.b16 %v180
      %v305 = vunpack.c.l.b16 %v182
      %v306 = vunpack.c.l.b16 %v184
      %v307 = vunpack.c.l.b16 %v186
      %v308 = vpack.c.b16 %v301, %v300
      %v309 = vpack.c.b16 %v303, %v302
      %v310 = vpack.c.b16 %v305, %v304
      %v311 = vpack.c.b16 %v307, %v306
      %v313 = vsel %vm246, %v308, 0
      %v316 = vsel %vm246, %v309, 0
      %v319 = vsel %vm246, %v310, 0
      %v322 = vsel %vm246, %v311, 0
      %v325 = vsel %vm259, %v223, 0
      %327 = vmatpush.bf16.msra.mxu0 0
      %328 = vmatpush.bf16.msra.mxu0 0
      %329 = vmatpush.bf16.msra.mxu0 0
      %330 = vmatpush.bf16.msra.mxu0 0
      %331 = vmatpush.bf16.msra.mxu0 0
      %332 = vmatpush.bf16.msra.mxu0 0
      %333 = vmatpush.bf16.msra.mxu0 0
      %334 = vmatpush.bf16.msra.mxu0 %v325
      %335 = vmatmul.bf16.gmra.mxu0 %v313
      %v336 = vpop.f32.mrf.mxu0
      %v337 = vadd.f32 %v273, %v336
      %v338 = vpop.f32.mrf.mxu0
      %v339 = vadd.f32 %v275, %v338
      %340 = vmatmul.bf16.gmra.mxu0 %v316
      %v341 = vpop.f32.mrf.mxu0
      %v342 = vadd.f32 %v278, %v341
      %v343 = vpop.f32.mrf.mxu0
      %v344 = vadd.f32 %v280, %v343
      %345 = vmatmul.bf16.gmra.mxu0 %v319
      %v346 = vpop.f32.mrf.mxu0
      %v347 = vadd.f32 %v283, %v346
      %v348 = vpop.f32.mrf.mxu0
      %v349 = vadd.f32 %v285, %v348
      %350 = vmatmul.bf16.gmra.mxu0 %v322
      %v351 = vpop.f32.mrf.mxu0
      %v352 = vadd.f32 %v288, %v351
      %v353 = vpop.f32.mrf.mxu0
      %v354 = vadd.f32 %v290, %v353
      %355 = vdwg.mxu0
      %vm356 = vsmask.f32 3328
      %vm357 = vsmask.f32 7440
      %vm358 = vmor %vm356, %vm357
      %v360 = vshrl.u32 %v172, 16
      %v362 = vrot.slane %v360, 4
      %v363 = vshll.u32 %v172, 16
      %v365 = vrot.slane %v363, 5
      %v366 = vor.u32 %v362, %v365
      %v367 = vrot.slane %v366, 4
      %v369 = vshll.u32 %v173, 16
      %v371 = vrot.slane %v369, 5
      %v372 = vsel %vm358, %v367, %v371
      %v374 = vshrl.u32 %v174, 16
      %v376 = vrot.slane %v374, 4
      %v377 = vshll.u32 %v174, 16
      %v379 = vrot.slane %v377, 5
      %v380 = vor.u32 %v376, %v379
      %v381 = vrot.slane %v380, 4
      %v383 = vshll.u32 %v175, 16
      %v385 = vrot.slane %v383, 5
      %v386 = vsel %vm358, %v381, %v385
      %v388 = vshrl.u32 %v176, 16
      %v390 = vrot.slane %v388, 4
      %v391 = vshll.u32 %v176, 16
      %v393 = vrot.slane %v391, 5
      %v394 = vor.u32 %v390, %v393
      %v395 = vrot.slane %v394, 4
      %v397 = vshll.u32 %v177, 16
      %v399 = vrot.slane %v397, 5
      %v400 = vsel %vm358, %v395, %v399
      %v402 = vshrl.u32 %v178, 16
      %v404 = vrot.slane %v402, 4
      %v405 = vshll.u32 %v178, 16
      %v407 = vrot.slane %v405, 5
      %v408 = vor.u32 %v404, %v407
      %v409 = vrot.slane %v408, 4
      %v411 = vshll.u32 %v179, 16
      %v413 = vrot.slane %v411, 5
      %v414 = vsel %vm358, %v409, %v413
      %v416 = vshrl.u32 %v180, 16
      %v418 = vrot.slane %v416, 4
      %v419 = vshll.u32 %v180, 16
      %v421 = vrot.slane %v419, 5
      %v422 = vor.u32 %v418, %v421
      %v423 = vrot.slane %v422, 4
      %v425 = vshll.u32 %v181, 16
      %v427 = vrot.slane %v425, 5
      %v428 = vsel %vm358, %v423, %v427
      %v430 = vshrl.u32 %v182, 16
      %v432 = vrot.slane %v430, 4
      %v433 = vshll.u32 %v182, 16
      %v435 = vrot.slane %v433, 5
      %v436 = vor.u32 %v432, %v435
      %v437 = vrot.slane %v436, 4
      %v439 = vshll.u32 %v183, 16
      %v441 = vrot.slane %v439, 5
      %v442 = vsel %vm358, %v437, %v441
      %v444 = vshrl.u32 %v184, 16
      %v446 = vrot.slane %v444, 4
      %v447 = vshll.u32 %v184, 16
      %v449 = vrot.slane %v447, 5
      %v450 = vor.u32 %v446, %v449
      %v451 = vrot.slane %v450, 4
      %v453 = vshll.u32 %v185, 16
      %v455 = vrot.slane %v453, 5
      %v456 = vsel %vm358, %v451, %v455
      %v458 = vshrl.u32 %v186, 16
      %v460 = vrot.slane %v458, 4
      %v461 = vshll.u32 %v186, 16
      %v463 = vrot.slane %v461, 5
      %v464 = vor.u32 %v460, %v463
      %v465 = vrot.slane %v464, 4
      %v467 = vshll.u32 %v187, 16
      %v469 = vrot.slane %v467, 5
      %v470 = vsel %vm358, %v465, %v469
      %s471 = scalar_lea.vmem %s1, 4
      %v472 = vld [vmem:[%s471] sm:$0x3]
      %v473 = vunpack.c.l.b16 %v372
      %v474 = vunpack.c.l.b16 %v386
      %v475 = vunpack.c.l.b16 %v400
      %v476 = vunpack.c.l.b16 %v414
      %v477 = vunpack.c.l.b16 %v428
      %v478 = vunpack.c.l.b16 %v442
      %v479 = vunpack.c.l.b16 %v456
      %v480 = vunpack.c.l.b16 %v470
      %v481 = vpack.c.b16 %v474, %v473
      %v482 = vpack.c.b16 %v476, %v475
      %v483 = vpack.c.b16 %v478, %v477
      %v484 = vpack.c.b16 %v480, %v479
      %v486 = vsel %vm246, %v481, 0
      %v489 = vsel %vm246, %v482, 0
      %v492 = vsel %vm246, %v483, 0
      %v495 = vsel %vm246, %v484, 0
      %v498 = vsel %vm259, %v472, 0
      %500 = vmatpush.bf16.msra.mxu0 0
      %501 = vmatpush.bf16.msra.mxu0 0
      %502 = vmatpush.bf16.msra.mxu0 0
      %503 = vmatpush.bf16.msra.mxu0 0
      %504 = vmatpush.bf16.msra.mxu0 0
      %505 = vmatpush.bf16.msra.mxu0 0
      %506 = vmatpush.bf16.msra.mxu0 0
      %507 = vmatpush.bf16.msra.mxu0 %v498
      %508 = vmatmul.bf16.gmra.mxu0 %v486
      %v509 = vpop.f32.mrf.mxu0
      %v510 = vadd.f32 0.0, %v509
      %v511 = vpop.f32.mrf.mxu0
      %v512 = vadd.f32 0.0, %v511
      %513 = vmatmul.bf16.gmra.mxu0 %v489
      %v514 = vpop.f32.mrf.mxu0
      %v515 = vadd.f32 0.0, %v514
      %v516 = vpop.f32.mrf.mxu0
      %v517 = vadd.f32 0.0, %v516
      %518 = vmatmul.bf16.gmra.mxu0 %v492
      %v519 = vpop.f32.mrf.mxu0
      %v520 = vadd.f32 0.0, %v519
      %v521 = vpop.f32.mrf.mxu0
      %v522 = vadd.f32 0.0, %v521
      %523 = vmatmul.bf16.gmra.mxu0 %v495
      %v524 = vpop.f32.mrf.mxu0
      %v525 = vadd.f32 0.0, %v524
      %v526 = vpop.f32.mrf.mxu0
      %v527 = vadd.f32 0.0, %v526
      %528 = vdwg.mxu0
      %v529 = vadd.f32 %v337, %v510
      %v530 = vadd.f32 %v339, %v512
      %v531 = vadd.f32 %v342, %v515
      %v532 = vadd.f32 %v344, %v517
      %v533 = vadd.f32 %v347, %v520
      %v534 = vadd.f32 %v349, %v522
      %v535 = vadd.f32 %v352, %v525
      %v536 = vadd.f32 %v354, %v527
      %s537 = scalar_lea.vmem %s1, 6
      %v538 = vld [vmem:[%s537] sm:$0x3]
      %v547 = vunpack.c.l.b16 %v199
      %v548 = vunpack.c.l.b16 %v201
      %v549 = vunpack.c.l.b16 %v203
      %v550 = vunpack.c.l.b16 %v205
      %v551 = vunpack.c.l.b16 %v207
      %v552 = vunpack.c.l.b16 %v209
      %v553 = vunpack.c.l.b16 %v211
      %v554 = vunpack.c.l.b16 %v213
      %v555 = vpack.c.b16 %v548, %v547
      %v556 = vpack.c.b16 %v550, %v549
      %v557 = vpack.c.b16 %v552, %v551
      %v558 = vpack.c.b16 %v554, %v553
      %v560 = vsel %vm246, %v555, 0
      %v563 = vsel %vm246, %v556, 0
      %v566 = vsel %vm246, %v557, 0
      %v569 = vsel %vm246, %v558, 0
      %v572 = vsel %vm259, %v538, 0
      %574 = vmatpush.bf16.msra.mxu0 0
      %575 = vmatpush.bf16.msra.mxu0 0
      %576 = vmatpush.bf16.msra.mxu0 0
      %577 = vmatpush.bf16.msra.mxu0 0
      %578 = vmatpush.bf16.msra.mxu0 0
      %579 = vmatpush.bf16.msra.mxu0 0
      %580 = vmatpush.bf16.msra.mxu0 0
      %581 = vmatpush.bf16.msra.mxu0 %v572
      %582 = vmatmul.bf16.gmra.mxu0 %v560
      %v583 = vpop.f32.mrf.mxu0
      %v584 = vadd.f32 0.0, %v583
      %v585 = vpop.f32.mrf.mxu0
      %v586 = vadd.f32 0.0, %v585
      %587 = vmatmul.bf16.gmra.mxu0 %v563
      %v588 = vpop.f32.mrf.mxu0
      %v589 = vadd.f32 0.0, %v588
      %v590 = vpop.f32.mrf.mxu0
      %v591 = vadd.f32 0.0, %v590
      %592 = vmatmul.bf16.gmra.mxu0 %v566
      %v593 = vpop.f32.mrf.mxu0
      %v594 = vadd.f32 0.0, %v593
      %v595 = vpop.f32.mrf.mxu0
      %v596 = vadd.f32 0.0, %v595
      %597 = vmatmul.bf16.gmra.mxu0 %v569
      %v598 = vpop.f32.mrf.mxu0
      %v599 = vadd.f32 0.0, %v598
      %v600 = vpop.f32.mrf.mxu0
      %v601 = vadd.f32 0.0, %v600
      %602 = vdwg.mxu0
      %v603 = vadd.f32 %v529, %v584
      %v604 = vadd.f32 %v530, %v586
      %v605 = vadd.f32 %v531, %v589
      %v606 = vadd.f32 %v532, %v591
      %v607 = vadd.f32 %v533, %v594
      %v608 = vadd.f32 %v534, %v596
      %v609 = vadd.f32 %v535, %v599
      %v610 = vadd.f32 %v536, %v601
      %s611 = scalar_lea.vmem %s1, 8
      %v612 = vld [vmem:[%s611] sm:$0x3]
      %v621 = vunpack.c.l.b16 %v215
      %v622 = vunpack.c.l.b16 %v216
      %v623 = vunpack.c.l.b16 %v217
      %v624 = vunpack.c.l.b16 %v218
      %v625 = vunpack.c.l.b16 %v219
      %v626 = vunpack.c.l.b16 %v220
      %v627 = vunpack.c.l.b16 %v221
      %v628 = vunpack.c.l.b16 %v222
      %v629 = vpack.c.b16 %v622, %v621
      %v630 = vpack.c.b16 %v624, %v623
      %v631 = vpack.c.b16 %v626, %v625
      %v632 = vpack.c.b16 %v628, %v627
      %v634 = vsel %vm246, %v629, 0
      %v637 = vsel %vm246, %v630, 0
      %v640 = vsel %vm246, %v631, 0
      %v643 = vsel %vm246, %v632, 0
      %v646 = vsel %vm259, %v612, 0
      %648 = vmatpush.bf16.msra.mxu0 0
      %649 = vmatpush.bf16.msra.mxu0 0
      %650 = vmatpush.bf16.msra.mxu0 0
      %651 = vmatpush.bf16.msra.mxu0 0
      %652 = vmatpush.bf16.msra.mxu0 0
      %653 = vmatpush.bf16.msra.mxu0 0
      %654 = vmatpush.bf16.msra.mxu0 0
      %655 = vmatpush.bf16.msra.mxu0 %v646
      %656 = vmatmul.bf16.gmra.mxu0 %v634
      %v657 = vpop.f32.mrf.mxu0
      %v658 = vadd.f32 0.0, %v657
      %v659 = vpop.f32.mrf.mxu0
      %v660 = vadd.f32 0.0, %v659
      %661 = vmatmul.bf16.gmra.mxu0 %v637
      %v662 = vpop.f32.mrf.mxu0
      %v663 = vadd.f32 0.0, %v662
      %v664 = vpop.f32.mrf.mxu0
      %v665 = vadd.f32 0.0, %v664
      %666 = vmatmul.bf16.gmra.mxu0 %v640
      %v667 = vpop.f32.mrf.mxu0
      %v668 = vadd.f32 0.0, %v667
      %v669 = vpop.f32.mrf.mxu0
      %v670 = vadd.f32 0.0, %v669
      %671 = vmatmul.bf16.gmra.mxu0 %v643
      %v672 = vpop.f32.mrf.mxu0
      %v673 = vadd.f32 0.0, %v672
      %v674 = vpop.f32.mrf.mxu0
      %v675 = vadd.f32 0.0, %v674
      %676 = vdwg.mxu0
      %v677 = vadd.f32 %v603, %v658
      %v678 = vadd.f32 %v604, %v660
      %v679 = vadd.f32 %v605, %v663
      %v680 = vadd.f32 %v606, %v665
      %v681 = vadd.f32 %v607, %v668
      %v682 = vadd.f32 %v608, %v670
      %v683 = vadd.f32 %v609, %v673
      %v684 = vadd.f32 %v610, %v675
      %v686 = vshrl.u32 %v199, 16
      %v688 = vrot.slane %v686, 4
      %v689 = vshll.u32 %v199, 16
      %v691 = vrot.slane %v689, 5
      %v692 = vor.u32 %v688, %v691
      %v693 = vrot.slane %v692, 4
      %v695 = vshll.u32 %v200, 16
      %v697 = vrot.slane %v695, 5
      %v698 = vsel %vm358, %v693, %v697
      %v700 = vshrl.u32 %v201, 16
      %v702 = vrot.slane %v700, 4
      %v703 = vshll.u32 %v201, 16
      %v705 = vrot.slane %v703, 5
      %v706 = vor.u32 %v702, %v705
      %v707 = vrot.slane %v706, 4
      %v709 = vshll.u32 %v202, 16
      %v711 = vrot.slane %v709, 5
      %v712 = vsel %vm358, %v707, %v711
      %v714 = vshrl.u32 %v203, 16
      %v716 = vrot.slane %v714, 4
      %v717 = vshll.u32 %v203, 16
      %v719 = vrot.slane %v717, 5
      %v720 = vor.u32 %v716, %v719
      %v721 = vrot.slane %v720, 4
      %v723 = vshll.u32 %v204, 16
      %v725 = vrot.slane %v723, 5
      %v726 = vsel %vm358, %v721, %v725
      %v728 = vshrl.u32 %v205, 16
      %v730 = vrot.slane %v728, 4
      %v731 = vshll.u32 %v205, 16
      %v733 = vrot.slane %v731, 5
      %v734 = vor.u32 %v730, %v733
      %v735 = vrot.slane %v734, 4
      %v737 = vshll.u32 %v206, 16
      %v739 = vrot.slane %v737, 5
      %v740 = vsel %vm358, %v735, %v739
      %v742 = vshrl.u32 %v207, 16
      %v744 = vrot.slane %v742, 4
      %v745 = vshll.u32 %v207, 16
      %v747 = vrot.slane %v745, 5
      %v748 = vor.u32 %v744, %v747
      %v749 = vrot.slane %v748, 4
      %v751 = vshll.u32 %v208, 16
      %v753 = vrot.slane %v751, 5
      %v754 = vsel %vm358, %v749, %v753
      %v756 = vshrl.u32 %v209, 16
      %v758 = vrot.slane %v756, 4
      %v759 = vshll.u32 %v209, 16
      %v761 = vrot.slane %v759, 5
      %v762 = vor.u32 %v758, %v761
      %v763 = vrot.slane %v762, 4
      %v765 = vshll.u32 %v210, 16
      %v767 = vrot.slane %v765, 5
      %v768 = vsel %vm358, %v763, %v767
      %v770 = vshrl.u32 %v211, 16
      %v772 = vrot.slane %v770, 4
      %v773 = vshll.u32 %v211, 16
      %v775 = vrot.slane %v773, 5
      %v776 = vor.u32 %v772, %v775
      %v777 = vrot.slane %v776, 4
      %v779 = vshll.u32 %v212, 16
      %v781 = vrot.slane %v779, 5
      %v782 = vsel %vm358, %v777, %v781
      %v784 = vshrl.u32 %v213, 16
      %v786 = vrot.slane %v784, 4
      %v787 = vshll.u32 %v213, 16
      %v789 = vrot.slane %v787, 5
      %v790 = vor.u32 %v786, %v789
      %v791 = vrot.slane %v790, 4
      %v793 = vshll.u32 %v214, 16
      %v795 = vrot.slane %v793, 5
      %v796 = vsel %vm358, %v791, %v795
      %s797 = scalar_lea.vmem %s1, 10
      %v798 = vld [vmem:[%s797] sm:$0x3]
      %v799 = vunpack.c.l.b16 %v698
      %v800 = vunpack.c.l.b16 %v712
      %v801 = vunpack.c.l.b16 %v726
      %v802 = vunpack.c.l.b16 %v740
      %v803 = vunpack.c.l.b16 %v754
      %v804 = vunpack.c.l.b16 %v768
      %v805 = vunpack.c.l.b16 %v782
      %v806 = vunpack.c.l.b16 %v796
      %v807 = vpack.c.b16 %v800, %v799
      %v808 = vpack.c.b16 %v802, %v801
      %v809 = vpack.c.b16 %v804, %v803
      %v810 = vpack.c.b16 %v806, %v805
      %v812 = vsel %vm246, %v807, 0
      %v815 = vsel %vm246, %v808, 0
      %v818 = vsel %vm246, %v809, 0
      %v821 = vsel %vm246, %v810, 0
      %v824 = vsel %vm259, %v798, 0
      %826 = vmatpush.bf16.msra.mxu0 0
      %827 = vmatpush.bf16.msra.mxu0 0
      %828 = vmatpush.bf16.msra.mxu0 0
      %829 = vmatpush.bf16.msra.mxu0 0
      %830 = vmatpush.bf16.msra.mxu0 0
      %831 = vmatpush.bf16.msra.mxu0 0
      %832 = vmatpush.bf16.msra.mxu0 0
      %833 = vmatpush.bf16.msra.mxu0 %v824
      %834 = vmatmul.bf16.gmra.mxu0 %v812
      %v835 = vpop.f32.mrf.mxu0
      %v836 = vadd.f32 0.0, %v835
      %v837 = vpop.f32.mrf.mxu0
      %v838 = vadd.f32 0.0, %v837
      %839 = vmatmul.bf16.gmra.mxu0 %v815
      %v840 = vpop.f32.mrf.mxu0
      %v841 = vadd.f32 0.0, %v840
      %v842 = vpop.f32.mrf.mxu0
      %v843 = vadd.f32 0.0, %v842
      %844 = vmatmul.bf16.gmra.mxu0 %v818
      %v845 = vpop.f32.mrf.mxu0
      %v846 = vadd.f32 0.0, %v845
      %v847 = vpop.f32.mrf.mxu0
      %v848 = vadd.f32 0.0, %v847
      %849 = vmatmul.bf16.gmra.mxu0 %v821
      %v850 = vpop.f32.mrf.mxu0
      %v851 = vadd.f32 0.0, %v850
      %v852 = vpop.f32.mrf.mxu0
      %v853 = vadd.f32 0.0, %v852
      %854 = vdwg.mxu0
      %v855 = vadd.f32 %v677, %v836
      %v856 = vadd.f32 %v678, %v838
      %v857 = vadd.f32 %v679, %v841
      %v858 = vadd.f32 %v680, %v843
      %v859 = vadd.f32 %v681, %v846
      %v860 = vadd.f32 %v682, %v848
      %v861 = vadd.f32 %v683, %v851
      %v862 = vadd.f32 %v684, %v853
      %s863 = scalar_lea.vmem %s1, 12
      %v864 = vld [vmem:[%s863] sm:$0x3]
      %v866 = vunpack.c.l.b16 %v188
      %v867 = vpack.c.b16 %v302, %v301
      %v868 = vpack.c.b16 %v304, %v303
      %v869 = vpack.c.b16 %v306, %v305
      %v870 = vpack.c.b16 %v866, %v307
      %v872 = vsel %vm246, %v867, 0
      %v875 = vsel %vm246, %v868, 0
      %v878 = vsel %vm246, %v869, 0
      %v881 = vsel %vm246, %v870, 0
      %v884 = vsel %vm259, %v864, 0
      %886 = vmatpush.bf16.msra.mxu0 0
      %887 = vmatpush.bf16.msra.mxu0 0
      %888 = vmatpush.bf16.msra.mxu0 0
      %889 = vmatpush.bf16.msra.mxu0 0
      %890 = vmatpush.bf16.msra.mxu0 0
      %891 = vmatpush.bf16.msra.mxu0 0
      %892 = vmatpush.bf16.msra.mxu0 0
      %893 = vmatpush.bf16.msra.mxu0 %v884
      %894 = vmatmul.bf16.gmra.mxu0 %v872
      %v895 = vpop.f32.mrf.mxu0
      %v896 = vadd.f32 0.0, %v895
      %v897 = vpop.f32.mrf.mxu0
      %v898 = vadd.f32 0.0, %v897
      %899 = vmatmul.bf16.gmra.mxu0 %v875
      %v900 = vpop.f32.mrf.mxu0
      %v901 = vadd.f32 0.0, %v900
      %v902 = vpop.f32.mrf.mxu0
      %v903 = vadd.f32 0.0, %v902
      %904 = vmatmul.bf16.gmra.mxu0 %v878
      %v905 = vpop.f32.mrf.mxu0
      %v906 = vadd.f32 0.0, %v905
      %v907 = vpop.f32.mrf.mxu0
      %v908 = vadd.f32 0.0, %v907
      %909 = vmatmul.bf16.gmra.mxu0 %v881
      %v910 = vpop.f32.mrf.mxu0
      %v911 = vadd.f32 0.0, %v910
      %v912 = vpop.f32.mrf.mxu0
      %v913 = vadd.f32 0.0, %v912
      %914 = vdwg.mxu0
      %v915 = vadd.f32 %v855, %v896
      %v916 = vadd.f32 %v856, %v898
      %v917 = vadd.f32 %v857, %v901
      %v918 = vadd.f32 %v858, %v903
      %v919 = vadd.f32 %v859, %v906
      %v920 = vadd.f32 %v860, %v908
      %v921 = vadd.f32 %v861, %v911
      %v922 = vadd.f32 %v862, %v913
      %s923 = scalar_lea.vmem %s1, 14
      %v924 = vld [vmem:[%s923] sm:$0x3]
      %v926 = vunpack.c.l.b16 %v198
      %v927 = vpack.c.b16 %v236, %v235
      %v928 = vpack.c.b16 %v238, %v237
      %v929 = vpack.c.b16 %v240, %v239
      %v930 = vpack.c.b16 %v926, %v241
      %v932 = vsel %vm246, %v927, 0
      %v935 = vsel %vm246, %v928, 0
      %v938 = vsel %vm246, %v929, 0
      %v941 = vsel %vm246, %v930, 0
      %v944 = vsel %vm259, %v924, 0
      %946 = vmatpush.bf16.msra.mxu0 0
      %947 = vmatpush.bf16.msra.mxu0 0
      %948 = vmatpush.bf16.msra.mxu0 0
      %949 = vmatpush.bf16.msra.mxu0 0
      %950 = vmatpush.bf16.msra.mxu0 0
      %951 = vmatpush.bf16.msra.mxu0 0
      %952 = vmatpush.bf16.msra.mxu0 0
      %953 = vmatpush.bf16.msra.mxu0 %v944
      %954 = vmatmul.bf16.gmra.mxu0 %v932
      %v955 = vpop.f32.mrf.mxu0
      %v956 = vadd.f32 0.0, %v955
      %v957 = vpop.f32.mrf.mxu0
      %v958 = vadd.f32 0.0, %v957
      %959 = vmatmul.bf16.gmra.mxu0 %v935
      %v960 = vpop.f32.mrf.mxu0
      %v961 = vadd.f32 0.0, %v960
      %v962 = vpop.f32.mrf.mxu0
      %v963 = vadd.f32 0.0, %v962
      %964 = vmatmul.bf16.gmra.mxu0 %v938
      %v965 = vpop.f32.mrf.mxu0
      %v966 = vadd.f32 0.0, %v965
      %v967 = vpop.f32.mrf.mxu0
      %v968 = vadd.f32 0.0, %v967
      %969 = vmatmul.bf16.gmra.mxu0 %v941
      %v970 = vpop.f32.mrf.mxu0
      %v971 = vadd.f32 0.0, %v970
      %v972 = vpop.f32.mrf.mxu0
      %v973 = vadd.f32 0.0, %v972
      %974 = vdwg.mxu0
      %v975 = vadd.f32 %v915, %v956
      %v976 = vadd.f32 %v916, %v958
      %v977 = vadd.f32 %v917, %v961
      %v978 = vadd.f32 %v918, %v963
      %v979 = vadd.f32 %v919, %v966
      %v980 = vadd.f32 %v920, %v968
      %v981 = vadd.f32 %v921, %v971
      %v982 = vadd.f32 %v922, %v973
      %v984 = vshrl.u32 %v188, 16
      %v986 = vrot.slane %v984, 4
      %v987 = vshll.u32 %v188, 16
      %v989 = vrot.slane %v987, 5
      %v990 = vor.u32 %v986, %v989
      %v991 = vrot.slane %v990, 4
      %v993 = vshll.u32 %v189, 16
      %v995 = vrot.slane %v993, 5
      %v996 = vsel %vm358, %v991, %v995
      %s997 = scalar_lea.vmem %s1, 16
      %v998 = vld [vmem:[%s997] sm:$0x3]
      %v999 = vunpack.c.l.b16 %v996
      %v1000 = vpack.c.b16 %v475, %v474
      %v1001 = vpack.c.b16 %v477, %v476
      %v1002 = vpack.c.b16 %v479, %v478
      %v1003 = vpack.c.b16 %v999, %v480
      %v1005 = vsel %vm246, %v1000, 0
      %v1008 = vsel %vm246, %v1001, 0
      %v1011 = vsel %vm246, %v1002, 0
      %v1014 = vsel %vm246, %v1003, 0
      %v1017 = vsel %vm259, %v998, 0
      %1019 = vmatpush.bf16.msra.mxu0 0
      %1020 = vmatpush.bf16.msra.mxu0 0
      %1021 = vmatpush.bf16.msra.mxu0 0
      %1022 = vmatpush.bf16.msra.mxu0 0
      %1023 = vmatpush.bf16.msra.mxu0 0
      %1024 = vmatpush.bf16.msra.mxu0 0
      %1025 = vmatpush.bf16.msra.mxu0 0
      %1026 = vmatpush.bf16.msra.mxu0 %v1017
      %1027 = vmatmul.bf16.gmra.mxu0 %v1005
      %v1028 = vpop.f32.mrf.mxu0
      %v1029 = vadd.f32 0.0, %v1028
      %v1030 = vpop.f32.mrf.mxu0
      %v1031 = vadd.f32 0.0, %v1030
      %1032 = vmatmul.bf16.gmra.mxu0 %v1008
      %v1033 = vpop.f32.mrf.mxu0
      %v1034 = vadd.f32 0.0, %v1033
      %v1035 = vpop.f32.mrf.mxu0
      %v1036 = vadd.f32 0.0, %v1035
      %1037 = vmatmul.bf16.gmra.mxu0 %v1011
      %v1038 = vpop.f32.mrf.mxu0
      %v1039 = vadd.f32 0.0, %v1038
      %v1040 = vpop.f32.mrf.mxu0
      %v1041 = vadd.f32 0.0, %v1040
      %1042 = vmatmul.bf16.gmra.mxu0 %v1014
      %v1043 = vpop.f32.mrf.mxu0
      %v1044 = vadd.f32 0.0, %v1043
      %v1045 = vpop.f32.mrf.mxu0
      %v1046 = vadd.f32 0.0, %v1045
      %1047 = vdwg.mxu0
      %v1048 = vadd.f32 %v975, %v1029
      %v1049 = vadd.f32 %v976, %v1031
      %v1050 = vadd.f32 %v977, %v1034
      %v1051 = vadd.f32 %v978, %v1036
      %v1052 = vadd.f32 %v979, %v1039
      %v1053 = vadd.f32 %v980, %v1041
      %v1054 = vadd.f32 %v981, %v1044
      %v1055 = vadd.f32 %v982, %v1046
      %v1056 = vld [vmem:[%s2] sm:$0x1]
      %v1058 = vperm.slane %v1056, 0
      %v1060 = vadd.f32 %v1048, %v1058
      %v1061 = vadd.f32 %v1049, %v1058
      %v1062 = vadd.f32 %v1050, %v1058
      %v1063 = vadd.f32 %v1051, %v1058
      %v1064 = vadd.f32 %v1052, %v1058
      %v1065 = vadd.f32 %v1053, %v1058
      %v1066 = vadd.f32 %v1054, %v1058
      %v1067 = vadd.f32 %v1055, %v1058
      %v1068 = vmax.f32 %v1060, 0.0
      %v1069 = vmax.f32 %v1061, 0.0
      %v1070 = vmax.f32 %v1062, 0.0
      %v1071 = vmax.f32 %v1063, 0.0
      %v1072 = vmax.f32 %v1064, 0.0
      %v1073 = vmax.f32 %v1065, 0.0
      %v1074 = vmax.f32 %v1066, 0.0
      %v1075 = vmax.f32 %v1067, 0.0
      %v1076 = vpack.c.bf16 %v1068, %v1068
      %v1077 = vpack.c.bf16 %v1069, %v1069
      %v1078 = vpack.c.bf16 %v1070, %v1070
      %v1079 = vpack.c.bf16 %v1071, %v1071
      %v1080 = vpack.c.bf16 %v1072, %v1072
      %v1081 = vpack.c.bf16 %v1073, %v1073
      %v1082 = vpack.c.bf16 %v1074, %v1074
      %v1083 = vpack.c.bf16 %v1075, %v1075
      %1084 = vst [vmem:[%s170] sm:$0xf] %v1076
      %1085 = vst [vmem:[%s170 + $0x4] sm:$0xf] %v1077
      %1086 = vst [vmem:[%s170 + $0x8] sm:$0xf] %v1078
      %1087 = vst [vmem:[%s170 + $0xc] sm:$0xf] %v1079
      %1088 = vst [vmem:[%s170 + $0x10] sm:$0xf] %v1080
      %1089 = vst [vmem:[%s170 + $0x14] sm:$0xf] %v1081
      %1090 = vst [vmem:[%s170 + $0x18] sm:$0xf] %v1082
      %1091 = vst [vmem:[%s170 + $0x1c] sm:$0xf] %v1083
      %p1092 = scmp.lt.s32.totalorder %s14, 1
      %s1093 = scalar_select %p1092, %s14, 1
      %s1094 = smul.addr %s1093, 8
      %s1095 = smul.addr %s1094, 4
      %s1096 = scalar_lea.vmem %s3, %s1095
      // Predicated region
      $region33: #{sepconv_forward.2} parent=31 // pred_check
        %p1097 = pneg %p100
      $region34: #{sepconv_forward.2} parent=31 // pred_check_branch
        %1099 = sbr.rel (%p1097) target = $region36
      $region35: #{sepconv_forward.2} parent=31 // pred_region
        _
      $region36: #{sepconv_forward.2} parent=31 // pred_fallthru
        _
    $region32: #{sepconv_forward.2} parent=5 // pred_fallthru
      _
    %p1100 = scmp.le.s32.totalorder 2, %s9
    // Predicated region
    $region37: #{sepconv_forward.2} parent=5 // pred_check
      %p1101 = pneg %p1100
    $region38: #{sepconv_forward.2} parent=5 // pred_check_branch
      %1103 = sbr.rel (%p1101) target = $region40
    $region39: #{sepconv_forward.2} parent=5 // pred_region
      %s1104 = ssub.s32 %s9, 2
      // Predicated region
      $region41: #{sepconv_forward.2} parent=39 // pred_check
        %p1105 = pneg %p106
      $region42: #{sepconv_forward.2} parent=39 // pred_check_branch
        %1107 = sbr.rel (%p1105) target = $region44
      $region43: #{sepconv_forward.2} parent=39 // pred_region
        %p1108 = scmp.lt.s32.totalorder %s15, 1
        %s1109 = scalar_select %p1108, %s15, 1
        %s1110 = smul.addr %s1109, 8
        %s1111 = smul.addr %s1110, 4
        %s1112 = scalar_lea.vmem %s3, %s1111
      $region44: #{sepconv_forward.2} parent=39 // pred_fallthru
        _
    $region40: #{sepconv_forward.2} parent=5 // pred_fallthru
      _
  $region6: #{sepconv_forward.2} parent=0 // loop_footer
    %s13 = sadd.s32 1, %s9
  $region7: #{sepconv_forward.2} parent=0 // loop_footer_branch
    %8 = sbr.rel target = $region3
  $region8: #{sepconv_forward.2} parent=0 // loop_exit
    _

</llo_original>
